<compile_context>
chip_gen: v7x
topology: tpu7x:2x2x1
jax: 0.10.0
libtpu: 0.0.40
codegen_flags: <defaults>
</compile_context>

<pallas_src>
from typing import List, Optional

import jax
import jax.numpy as jnp
from jax.experimental import pallas as pl
from jax.experimental.pallas import tpu as pltpu


# ----------------------------------------------------------------------------
# Plain-JAX glue: sampling & grouping (data-dependent gathers, sort, argmax)
# ----------------------------------------------------------------------------
def square_distance(src: jnp.ndarray, dst: jnp.ndarray) -> jnp.ndarray:
    # src [B,N,C], dst [B,M,C] -> [B,N,M]
    dist = -2.0 * jnp.einsum("bnc,bmc->bnm", src, dst)
    dist = dist + jnp.sum(src ** 2, -1)[:, :, None]
    dist = dist + jnp.sum(dst ** 2, -1)[:, None, :]
    return jnp.maximum(dist, 0.0)


def index_points(points: jnp.ndarray, idx: jnp.ndarray) -> jnp.ndarray:
    # points [B,N,C]; idx [B,S] -> [B,S,C]  or idx [B,S,K] -> [B,S,K,C]
    B, N = points.shape[0], points.shape[1]
    idx = jnp.clip(idx, 0, N - 1)
    if idx.ndim == 2:
        b = jnp.arange(B)[:, None]
        return points[b, idx]
    elif idx.ndim == 3:
        b = jnp.arange(B)[:, None, None]
        return points[b, idx]
    raise ValueError(f"Unsupported index dimension: {idx.ndim}")


def farthest_point_sample(xyz: jnp.ndarray, npoint: int, key) -> jnp.ndarray:
    # xyz [B,N,3] -> centroid indices [B,npoint]
    B, N, _ = xyz.shape
    npoint = min(npoint, N)
    distance = jnp.full((B, N), 1e18, dtype=xyz.dtype)
    farthest = jax.random.randint(key, (B,), 0, N, dtype=jnp.int32)
    centroids = jnp.zeros((B, npoint), dtype=jnp.int32)
    batch_idx = jnp.arange(B)

    def body(i, carry):
        cents, dist_acc, far = carry
        cents = cents.at[:, i].set(far)
        centroid = xyz[batch_idx, far][:, None, :]            # [B,1,3]
        d = jnp.sum((xyz - centroid) ** 2, -1)                # [B,N]
        dist_acc = jnp.minimum(dist_acc, d)
        far = jnp.argmax(dist_acc, -1).astype(jnp.int32)
        return cents, dist_acc, far

    centroids, _, _ = jax.lax.fori_loop(
        0, npoint, body, (centroids, distance, farthest))
    return centroids


def query_ball_point(radius: float, nsample: int, xyz: jnp.ndarray,
                     new_xyz: jnp.ndarray) -> jnp.ndarray:
    # -> [B, S, nsample] neighbour indices
    B, N, _ = xyz.shape
    S = new_xyz.shape[1]
    nsample = min(nsample, N)
    sqrdists = square_distance(new_xyz, xyz)                   # [B,S,N]
    group_idx = jnp.broadcast_to(jnp.arange(N, dtype=jnp.int32), (B, S, N))
    group_idx = jnp.where(sqrdists > radius ** 2, N, group_idx)
    group_idx = jnp.sort(group_idx, axis=-1)[:, :, :nsample]
    first = jnp.repeat(group_idx[:, :, :1], nsample, axis=-1)
    group_idx = jnp.where(group_idx >= N, first, group_idx)
    return jnp.clip(group_idx, 0, N - 1)


# ----------------------------------------------------------------------------
# Pallas kernel: shared MLP (1x1 conv + folded BN + ReLU) + max-pool over K
# ----------------------------------------------------------------------------
def _make_mlp_maxpool_kernel(num_layers: int, K: int, TS: int, defer_last: bool):
    def kernel(x_ref, *rest):
        o_ref = rest[-1]                 # (TS, C_out_pad) f32
        params = rest[:-1]               # (w, scale, shift) per layer

        # (K, TS, C_in) -> (K*TS, C_in): free relayout (TS is a multiple of the
        # 16-row bf16 sublane tile).  Every MLP layer is now ONE matmul with
        # M = K*TS, so the MXU is fed thousands of rows per grid step.
        h = x_ref[...].reshape(K * TS, x_ref.shape[-1])        # bf16

        for l in range(num_layers):
            w = params[3 * l][...]
            h = jnp.dot(h, w, preferred_element_type=jnp.float32)
            if l < num_layers - 1:
                sc = params[3 * l + 1][...]
                sh = params[3 * l + 2][...]
                h = jnp.maximum(h * sc + sh, 0.0).astype(jnp.bfloat16)

        sc_last = params[3 * (num_layers - 1) + 1][...]
        sh_last = params[3 * (num_layers - 1) + 2][...]
        if not defer_last:
            h = jnp.maximum(h * sc_last + sh_last, 0.0)        # f32 epilogue

        # Max-pool over the K neighbour slabs — pure VPU on aligned slices.
        C = h.shape[-1]
        if K <= 32:
            acc = h[0:TS]
            for k in range(1, K):
                acc = jnp.maximum(acc, h[k * TS:(k + 1) * TS])
        else:
            acc = jnp.max(h.reshape(K, TS, C), axis=0)

        if defer_last:
            # Valid because the folded BN scale is strictly positive (checked
            # at trace time): max commutes with monotone affine + ReLU.
            acc = jnp.maximum(acc * sc_last + sh_last, 0.0)

        o_ref[...] = acc
    return kernel


def _round_up(x: int, m: int) -> int:
    return ((x + m - 1) // m) * m


def _tpu_vmem_limit_bytes() -> int:
    """Per-chip VMEM limit: ~48 MiB on v7x (64 MiB/TC), ~96 MiB on v5e/v6e."""
    phys = 64 * 1024 * 1024                       # conservative default (v7x)
    try:
        info = pltpu.get_tpu_info()
        phys = int(info.vmem_capacity_bytes)
    except Exception:
        pass
    return min(phys * 3 // 4, 100 * 1024 * 1024)


def _choose_tile(G: int, K: int, C_in: int, channels, vmem_limit: int) -> int:
    """Centroids per grid step (multiple of 16 for free bf16 reshapes).

    Uses the PHYSICAL (lane-padded) block footprint so the heuristic does not
    silently overshoot v7x's 64 MiB/TC VMEM.
    """
    c_in_pad = _round_up(max(C_in, 1), 128)
    max_c_pad = max([c_in_pad] + [_round_up(c, 128) for c in channels])
    c_out_pad = _round_up(max(channels[-1], 128), 128)
    budget = int(vmem_limit * 0.7)

    def footprint(ts):
        x_blk = 2 * K * ts * c_in_pad * 2          # bf16 input block, 2 buffers
        inter = 2 * K * ts * max_c_pad * 4         # f32 intermediate (+bf16 copy)
        out_blk = 2 * ts * c_out_pad * 4           # f32 output block, 2 buffers
        return x_blk + inter + out_blk

    ts = max(16, ((4096 // max(K, 1)) // 16) * 16)     # target M = K*TS ~ 4096
    ts = min(ts, _round_up(G, 16))
    while ts > 16 and footprint(ts) > budget:
        ts = max(16, ((ts // 2) // 16) * 16)
    # Keep at least 2 grid steps (pipelining + 2-TC megacore) when G allows it.
    half = max(16, (((G + 1) // 2) // 16) * 16)
    if G >= 32 and ts > half:
        ts = half
    return ts


def mlp_maxpool(grouped_kmajor: jnp.ndarray, ws, scales, shifts) -> jnp.ndarray:
    """grouped_kmajor: [K, B, S, C_in] (bf16) -> pooled features [B, S, C_out]."""
    K, B, S, C_in = grouped_kmajor.shape
    G = B * S
    C_out = ws[-1].shape[1]
    C_out_pad = _round_up(max(C_out, 128), 128)       # lane-dense output stores

    x = grouped_kmajor.reshape(K, G, C_in).astype(jnp.bfloat16)

    vmem_limit = _tpu_vmem_limit_bytes()
    TS = _choose_tile(G, K, C_in, [w.shape[1] for w in ws], vmem_limit)
    grid_len = pl.cdiv(G, TS)
    if grid_len > 1 and grid_len % 2 == 1:            # even grid -> clean 2-TC split
        grid_len += 1
    G_pad = grid_len * TS
    if G_pad != G:
        x = jnp.pad(x, ((0, 0), (0, G_pad - G), (0, 0)))

    # Parameters: bf16 weights (last layer padded to C_out_pad), f32 affine.
    ws_p, sc_p, sh_p = [], [], []
    for li, (w, sc, sh) in enumerate(zip(ws, scales, shifts)):
        if li == len(ws) - 1 and w.shape[1] != C_out_pad:
            pad = C_out_pad - w.shape[1]
            w = jnp.pad(w, ((0, 0), (0, pad)))
            sc = jnp.pad(sc, ((0, 0), (0, pad)), constant_values=1.0)
            sh = jnp.pad(sh, ((0, 0), (0, pad)))
        ws_p.append(w.astype(jnp.bfloat16))
        sc_p.append(sc.astype(jnp.float32))
        sh_p.append(sh.astype(jnp.float32))

    # Defer the last-layer affine+ReLU past the max-pool only when it commutes
    # (strictly positive folded BN scale on every channel).
    defer_last = bool(jnp.all(scales[-1] > 0))

    num_layers = len(ws)
    in_specs = [pl.BlockSpec((K, TS, C_in), lambda i: (0, i, 0))]
    args = [x]
    for w, sc, sh in zip(ws_p, sc_p, sh_p):
        # Constant index maps: Pallas DMAs these once and skips re-fetch
        # across grid steps (small VMEM footprint).
        in_specs.append(pl.BlockSpec(w.shape, lambda i: (0, 0)))
        in_specs.append(pl.BlockSpec(sc.shape, lambda i: (0, 0)))
        in_specs.append(pl.BlockSpec(sh.shape, lambda i: (0, 0)))
        args += [w, sc, sh]

    out = pl.pallas_call(
        _make_mlp_maxpool_kernel(num_layers, K, TS, defer_last),
        out_shape=jax.ShapeDtypeStruct((G_pad, C_out_pad), jnp.float32),
        grid=(grid_len,),
        in_specs=in_specs,
        out_specs=pl.BlockSpec((TS, C_out_pad), lambda i: (i, 0)),
        compiler_params=pltpu.CompilerParams(
            dimension_semantics=("parallel",),
            vmem_limit_bytes=vmem_limit),
    )(*args)

    return out[:G, :C_out].reshape(B, S, C_out)


# ----------------------------------------------------------------------------
# Module
# ----------------------------------------------------------------------------
class PointNetSetAbstraction:
    """PointNet++ Set Abstraction layer (Pallas MLP+pool hot path)."""

    def __init__(self, npoint: int, radius: float, nsample: int,
                 in_channel: int, mlp: List[int], group_all: bool, key):
        self.npoint = npoint
        self.radius = radius
        self.nsample = nsample
        self.group_all = group_all
        self.in_channel = in_channel
        self.eps = 1e-5

        # Deterministic parameter init (Conv2d 1x1 weight/bias + BatchNorm2d).
        # TODO(synk): BatchNorm uses eval-mode (running-stats) semantics;
        # train-mode batch statistics are not computed in the kernel.
        ws, scales, shifts = [], [], []
        last = in_channel
        for out_c in mlp:
            key, k1, k2, k3, k4, k5, k6 = jax.random.split(key, 7)
            w = jax.random.normal(k1, (last, out_c), jnp.float32) / jnp.sqrt(
                jnp.float32(last))
            b = 0.01 * jax.random.normal(k2, (out_c,), jnp.float32)
            gamma = 1.0 + 0.1 * jax.random.normal(k3, (out_c,), jnp.float32)
            beta = 0.1 * jax.random.normal(k4, (out_c,), jnp.float32)
            r_mean = 0.1 * jax.random.normal(k5, (out_c,), jnp.float32)
            r_var = 1.0 + 0.1 * jnp.abs(
                jax.random.normal(k6, (out_c,), jnp.float32))
            scale = gamma / jnp.sqrt(r_var + self.eps)
            shift = beta + scale * (b - r_mean)
            ws.append(w)
            scales.append(scale.reshape(1, out_c))
            shifts.append(shift.reshape(1, out_c))
            last = out_c
        self.ws, self.scales, self.shifts = ws, scales, shifts
        self.last_channel_out = last
        # FPS start point fixed at init (deterministic; the PyTorch reference
        # re-randomizes per call).
        self.fps_key = key

    def __call__(self, xyz: jnp.ndarray, points: Optional[jnp.ndarray]):
        # xyz: [B, N, 3];  points: [B, N, D] (or [B, D, N] -> transposed)
        if xyz.shape[-1] != 3:
            raise ValueError("xyz must have last dim 3")
        B, N, _ = xyz.shape
        if points is not None and points.shape[1] != N:
            if points.shape[2] == N:
                points = jnp.transpose(points, (0, 2, 1))
            else:
                raise ValueError(
                    f"Incompatible points {points.shape} / xyz {xyz.shape}")

        # Cast features to bf16 BEFORE the K-fold gather: the duplicated
        # grouped tensor (largest array in the pipeline) is shuffled at half
        # the bytes.  xyz stays f32 for the centroid subtraction.
        points_bf16 = points.astype(jnp.bfloat16) if points is not None else None

        if self.group_all:
            new_xyz = jnp.zeros((B, 1, 3), xyz.dtype)
            # K-major grouped tensor: [K=N, B, S=1, C]
            gxyz_k = jnp.transpose(xyz, (1, 0, 2))[:, :, None, :].astype(jnp.bfloat16)
            if points_bf16 is not None:
                gpts_k = jnp.transpose(points_bf16, (1, 0, 2))[:, :, None, :]
                grouped_k = jnp.concatenate([gxyz_k, gpts_k], axis=-1)
            else:
                grouped_k = gxyz_k
        else:
            fps_idx = farthest_point_sample(xyz, self.npoint, self.fps_key)
            new_xyz = index_points(xyz, fps_idx)                  # [B,S,3]
            idx = query_ball_point(self.radius, self.nsample, xyz, new_xyz)
            # Gather directly in K-major order: no [B,S,K,C] f32 tensor and no
            # extra transpose copy before the kernel.
            idx_k = jnp.clip(jnp.transpose(idx, (2, 0, 1)), 0, N - 1)  # [K,B,S]
            b_idx = jnp.arange(B, dtype=jnp.int32)[None, :, None]
            gxyz_k = xyz[b_idx, idx_k]                            # [K,B,S,3] f32
            gxyz_k = (gxyz_k - new_xyz[None, :, :, :]).astype(jnp.bfloat16)
            if points_bf16 is not None:
                gpts_k = points_bf16[b_idx, idx_k]                # [K,B,S,D] bf16
                grouped_k = jnp.concatenate([gxyz_k, gpts_k], axis=-1)
            else:
                grouped_k = gxyz_k

        if grouped_k.shape[-1] != self.in_channel:
            raise RuntimeError(
                f"Channel mismatch before MLP: expected {self.in_channel}, "
                f"got {grouped_k.shape[-1]}")

        # Pallas hot path: shared pointwise MLP + max-pool over neighbours.
        pooled = mlp_maxpool(grouped_k, self.ws, self.scales, self.shifts)
        new_points_out = jnp.transpose(pooled, (0, 2, 1))  # [B, mlp[-1], S]
        return new_xyz, new_points_out


# ----------------------------------------------------------------------------
# Demo + pure-JAX f32 reference check
# ----------------------------------------------------------------------------
if __name__ == "__main__":
    key = jax.random.PRNGKey(0)
    k_xyz, k_pts, k_param = jax.random.split(key, 3)

    B, N, D = 2, 64, 4
    npoint, radius, nsample = 32, 0.4, 16
    mlp = [16, 32]

    xyz = jax.random.uniform(k_xyz, (B, N, 3), jnp.float32)
    points = jax.random.normal(k_pts, (B, N, D), jnp.float32)

    sa = PointNetSetAbstraction(npoint=npoint, radius=radius, nsample=nsample,
                                in_channel=3 + D, mlp=mlp,
                                group_all=False, key=k_param)

    new_xyz, new_feats = sa(xyz, points)
    jax.block_until_ready((new_xyz, new_feats))

    assert new_xyz.shape == (B, npoint, 3), new_xyz.shape
    assert new_feats.shape == (B, mlp[-1], npoint), new_feats.shape
    assert bool(jnp.all(jnp.isfinite(new_feats)))

    # Pure-JAX f32 reference (same sampling indices, eval-mode folded BN).
    fps_idx = farthest_point_sample(xyz, npoint, sa.fps_key)
    ref_new_xyz = index_points(xyz, fps_idx)
    idx = query_ball_point(radius, nsample, xyz, ref_new_xyz)
    g_xyz = index_points(xyz, idx) - ref_new_xyz[:, :, None, :]
    g_pts = index_points(points, idx)
    h = jnp.concatenate([g_xyz, g_pts], axis=-1)            # [B,S,K,C_in] f32
    for w, sc, sh in zip(sa.ws, sa.scales, sa.shifts):
        h = jnp.maximum(jnp.einsum("bskc,cd->bskd", h, w) * sc + sh, 0.0)
    ref_feats = jnp.transpose(jnp.max(h, axis=2), (0, 2, 1))  # [B,C_out,S]

    assert bool(jnp.allclose(new_xyz, ref_new_xyz, atol=1e-6))
    err = float(jnp.max(jnp.abs(new_feats - ref_feats)))
    assert err < 0.1, f"max abs error vs f32 reference: {err}"

    print("KERNEL_OK")
</pallas_src>

<mosaic_0001>
module attributes {stable_mosaic.version = 11 : i64} {
  func.func @kernel(%arg0: i32, %arg1: memref<16x32x7xbf16, #tpu.memory_space<vmem>>, %arg2: memref<7x16xbf16, #tpu.memory_space<vmem>>, %arg3: memref<1x16xf32, #tpu.memory_space<vmem>>, %arg4: memref<1x16xf32, #tpu.memory_space<vmem>>, %arg5: memref<16x128xbf16, #tpu.memory_space<vmem>>, %arg6: memref<1x128xf32, #tpu.memory_space<vmem>>, %arg7: memref<1x128xf32, #tpu.memory_space<vmem>>, %arg8: memref<32x128xf32, #tpu.memory_space<vmem>>) attributes {dimension_semantics = [#tpu.dimension_semantics<parallel>], iteration_bounds = array<i64: 2>, scalar_prefetch = 0 : i64, scratch_operands = 0 : i64, tpu.core_type = #tpu.core_type<tc>, window_params = [{transform_indices = @transform_0, window_bounds = array<i64: 16, 32, 7>}, {pipeline_mode = #tpu.pipeline_mode<synchronous>, transform_indices = @transform_1, window_bounds = array<i64: 7, 16>}, {pipeline_mode = #tpu.pipeline_mode<synchronous>, transform_indices = @transform_2, window_bounds = array<i64: 1, 16>}, {pipeline_mode = #tpu.pipeline_mode<synchronous>, transform_indices = @transform_3, window_bounds = array<i64: 1, 16>}, {pipeline_mode = #tpu.pipeline_mode<synchronous>, transform_indices = @transform_4, window_bounds = array<i64: 16, 128>}, {pipeline_mode = #tpu.pipeline_mode<synchronous>, transform_indices = @transform_5, window_bounds = array<i64: 1, 128>}, {pipeline_mode = #tpu.pipeline_mode<synchronous>, transform_indices = @transform_6, window_bounds = array<i64: 1, 128>}, {transform_indices = @transform_7, window_bounds = array<i64: 32, 128>}]} {
    %c0 = arith.constant 0 : index
    %c0_0 = arith.constant 0 : index
    %c0_1 = arith.constant 0 : index
    %0 = vector.load %arg1[%c0, %c0_0, %c0_1] : memref<16x32x7xbf16, #tpu.memory_space<vmem>>, vector<16x32x7xbf16>
    %1 = vector.shape_cast %0 : vector<16x32x7xbf16> to vector<512x7xbf16>
    %c0_2 = arith.constant 0 : index
    %c0_3 = arith.constant 0 : index
    %2 = vector.load %arg2[%c0_2, %c0_3] : memref<7x16xbf16, #tpu.memory_space<vmem>>, vector<7x16xbf16>
    %cst = arith.constant dense<0.000000e+00> : vector<512x16xf32>
    %3 = tpu.matmul %1, %2, %cst {dimension_numbers = #tpu.dot_dimension_numbers<[1], [0], [0], [1], [0, 0, 1, 1], [], []>} : vector<512x7xbf16>, vector<7x16xbf16>, vector<512x16xf32> -> vector<512x16xf32>
    %c0_4 = arith.constant 0 : index
    %c0_5 = arith.constant 0 : index
    %4 = vector.load %arg3[%c0_4, %c0_5] : memref<1x16xf32, #tpu.memory_space<vmem>>, vector<1x16xf32>
    %c0_6 = arith.constant 0 : index
    %c0_7 = arith.constant 0 : index
    %5 = vector.load %arg4[%c0_6, %c0_7] : memref<1x16xf32, #tpu.memory_space<vmem>>, vector<1x16xf32>
    %6 = vector.broadcast %4 : vector<1x16xf32> to vector<512x16xf32>
    %7 = arith.mulf %3, %6 : vector<512x16xf32>
    %8 = vector.broadcast %5 : vector<1x16xf32> to vector<512x16xf32>
    %9 = arith.addf %7, %8 : vector<512x16xf32>
    %cst_8 = arith.constant 0.000000e+00 : f32
    %10 = vector.broadcast %cst_8 : f32 to vector<512x16xf32>
    %11 = arith.maximumf %9, %10 : vector<512x16xf32>
    %12 = arith.truncf %11 : vector<512x16xf32> to vector<512x16xbf16>
    %c0_9 = arith.constant 0 : index
    %c0_10 = arith.constant 0 : index
    %13 = vector.load %arg5[%c0_9, %c0_10] : memref<16x128xbf16, #tpu.memory_space<vmem>>, vector<16x128xbf16>
    %cst_11 = arith.constant dense<0.000000e+00> : vector<512x128xf32>
    %14 = tpu.matmul %12, %13, %cst_11 {dimension_numbers = #tpu.dot_dimension_numbers<[1], [0], [0], [1], [0, 0, 1, 1], [], []>} : vector<512x16xbf16>, vector<16x128xbf16>, vector<512x128xf32> -> vector<512x128xf32>
    %c0_12 = arith.constant 0 : index
    %c0_13 = arith.constant 0 : index
    %15 = vector.load %arg6[%c0_12, %c0_13] : memref<1x128xf32, #tpu.memory_space<vmem>>, vector<1x128xf32>
    %c0_14 = arith.constant 0 : index
    %c0_15 = arith.constant 0 : index
    %16 = vector.load %arg7[%c0_14, %c0_15] : memref<1x128xf32, #tpu.memory_space<vmem>>, vector<1x128xf32>
    %17 = vector.extract_strided_slice %14 {offsets = [0, 0], sizes = [32, 128], strides = [1, 1]} : vector<512x128xf32> to vector<32x128xf32>
    %18 = vector.extract_strided_slice %14 {offsets = [32, 0], sizes = [32, 128], strides = [1, 1]} : vector<512x128xf32> to vector<32x128xf32>
    %19 = arith.maximumf %17, %18 : vector<32x128xf32>
    %20 = vector.extract_strided_slice %14 {offsets = [64, 0], sizes = [32, 128], strides = [1, 1]} : vector<512x128xf32> to vector<32x128xf32>
    %21 = arith.maximumf %19, %20 : vector<32x128xf32>
    %22 = vector.extract_strided_slice %14 {offsets = [96, 0], sizes = [32, 128], strides = [1, 1]} : vector<512x128xf32> to vector<32x128xf32>
    %23 = arith.maximumf %21, %22 : vector<32x128xf32>
    %24 = vector.extract_strided_slice %14 {offsets = [128, 0], sizes = [32, 128], strides = [1, 1]} : vector<512x128xf32> to vector<32x128xf32>
    %25 = arith.maximumf %23, %24 : vector<32x128xf32>
    %26 = vector.extract_strided_slice %14 {offsets = [160, 0], sizes = [32, 128], strides = [1, 1]} : vector<512x128xf32> to vector<32x128xf32>
    %27 = arith.maximumf %25, %26 : vector<32x128xf32>
    %28 = vector.extract_strided_slice %14 {offsets = [192, 0], sizes = [32, 128], strides = [1, 1]} : vector<512x128xf32> to vector<32x128xf32>
    %29 = arith.maximumf %27, %28 : vector<32x128xf32>
    %30 = vector.extract_strided_slice %14 {offsets = [224, 0], sizes = [32, 128], strides = [1, 1]} : vector<512x128xf32> to vector<32x128xf32>
    %31 = arith.maximumf %29, %30 : vector<32x128xf32>
    %32 = vector.extract_strided_slice %14 {offsets = [256, 0], sizes = [32, 128], strides = [1, 1]} : vector<512x128xf32> to vector<32x128xf32>
    %33 = arith.maximumf %31, %32 : vector<32x128xf32>
    %34 = vector.extract_strided_slice %14 {offsets = [288, 0], sizes = [32, 128], strides = [1, 1]} : vector<512x128xf32> to vector<32x128xf32>
    %35 = arith.maximumf %33, %34 : vector<32x128xf32>
    %36 = vector.extract_strided_slice %14 {offsets = [320, 0], sizes = [32, 128], strides = [1, 1]} : vector<512x128xf32> to vector<32x128xf32>
    %37 = arith.maximumf %35, %36 : vector<32x128xf32>
    %38 = vector.extract_strided_slice %14 {offsets = [352, 0], sizes = [32, 128], strides = [1, 1]} : vector<512x128xf32> to vector<32x128xf32>
    %39 = arith.maximumf %37, %38 : vector<32x128xf32>
    %40 = vector.extract_strided_slice %14 {offsets = [384, 0], sizes = [32, 128], strides = [1, 1]} : vector<512x128xf32> to vector<32x128xf32>
    %41 = arith.maximumf %39, %40 : vector<32x128xf32>
    %42 = vector.extract_strided_slice %14 {offsets = [416, 0], sizes = [32, 128], strides = [1, 1]} : vector<512x128xf32> to vector<32x128xf32>
    %43 = arith.maximumf %41, %42 : vector<32x128xf32>
    %44 = vector.extract_strided_slice %14 {offsets = [448, 0], sizes = [32, 128], strides = [1, 1]} : vector<512x128xf32> to vector<32x128xf32>
    %45 = arith.maximumf %43, %44 : vector<32x128xf32>
    %46 = vector.extract_strided_slice %14 {offsets = [480, 0], sizes = [32, 128], strides = [1, 1]} : vector<512x128xf32> to vector<32x128xf32>
    %47 = arith.maximumf %45, %46 : vector<32x128xf32>
    %48 = vector.broadcast %15 : vector<1x128xf32> to vector<32x128xf32>
    %49 = arith.mulf %47, %48 : vector<32x128xf32>
    %50 = vector.broadcast %16 : vector<1x128xf32> to vector<32x128xf32>
    %51 = arith.addf %49, %50 : vector<32x128xf32>
    %cst_16 = arith.constant 0.000000e+00 : f32
    %52 = vector.broadcast %cst_16 : f32 to vector<32x128xf32>
    %53 = arith.maximumf %51, %52 : vector<32x128xf32>
    %c0_17 = arith.constant 0 : index
    %c0_18 = arith.constant 0 : index
    %54 = vector.load %arg8[%c0_17, %c0_18] : memref<32x128xf32, #tpu.memory_space<vmem>>, vector<32x128xf32>
    tpu.vector_store %arg8[%c0_17, %c0_18], %53 {strides = array<i32>} : memref<32x128xf32, #tpu.memory_space<vmem>>, vector<32x128xf32>,
    return
  }
  func.func @transform_0(%arg0: i32) -> (i32, i32, i32) {
    %c0_i32 = arith.constant 0 : i32
    %c0_i32_0 = arith.constant 0 : i32
    %c0_i32_1 = arith.constant 0 : i32
    return %c0_i32, %arg0, %c0_i32_0 : i32, i32, i32
  }
  func.func @transform_1(%arg0: i32) -> (i32, i32) {
    %c0_i32 = arith.constant 0 : i32
    %c0_i32_0 = arith.constant 0 : i32
    %c0_i32_1 = arith.constant 0 : i32
    return %c0_i32, %c0_i32_0 : i32, i32
  }
  func.func @transform_2(%arg0: i32) -> (i32, i32) {
    %c0_i32 = arith.constant 0 : i32
    %c0_i32_0 = arith.constant 0 : i32
    %c0_i32_1 = arith.constant 0 : i32
    return %c0_i32, %c0_i32_0 : i32, i32
  }
  func.func @transform_3(%arg0: i32) -> (i32, i32) {
    %c0_i32 = arith.constant 0 : i32
    %c0_i32_0 = arith.constant 0 : i32
    %c0_i32_1 = arith.constant 0 : i32
    return %c0_i32, %c0_i32_0 : i32, i32
  }
  func.func @transform_4(%arg0: i32) -> (i32, i32) {
    %c0_i32 = arith.constant 0 : i32
    %c0_i32_0 = arith.constant 0 : i32
    %c0_i32_1 = arith.constant 0 : i32
    return %c0_i32, %c0_i32_0 : i32, i32
  }
  func.func @transform_5(%arg0: i32) -> (i32, i32) {
    %c0_i32 = arith.constant 0 : i32
    %c0_i32_0 = arith.constant 0 : i32
    %c0_i32_1 = arith.constant 0 : i32
    return %c0_i32, %c0_i32_0 : i32, i32
  }
  func.func @transform_6(%arg0: i32) -> (i32, i32) {
    %c0_i32 = arith.constant 0 : i32
    %c0_i32_0 = arith.constant 0 : i32
    %c0_i32_1 = arith.constant 0 : i32
    return %c0_i32, %c0_i32_0 : i32, i32
  }
  func.func @transform_7(%arg0: i32) -> (i32, i32) {
    %c0_i32 = arith.constant 0 : i32
    %c0_i32_0 = arith.constant 0 : i32
    return %arg0, %c0_i32 : i32, i32
  }
}

</mosaic_0001>

<llo_original>
// kernel: tpu_custom_call.1
$region0: #{tpu_custom_call.1}
  #allocation0 [shape = 'u32[]', space=smem, size = 0x4, offset = 0x4, fixed_abs, tag = 'smem constant byte address 0x4 - core index']
  #allocation1 [shape = 'u32[144,128]{1,0:T(1,128)}', space=vmem, size = 0x12000, scoped, tag = 'internal scratch']
  %s0 = inlined_call_operand.vmem [shape: bf16[16,64,7], index: 0, kind: input, shape index: {}]
  %s1 = inlined_call_operand.vmem [shape: bf16[7,16], index: 1, kind: input, shape index: {}]
  %s2 = inlined_call_operand.vmem [shape: f32[1,16], index: 2, kind: input, shape index: {}]
  %s3 = inlined_call_operand.vmem [shape: f32[1,16], index: 3, kind: input, shape index: {}]
  %s4 = inlined_call_operand.vmem [shape: bf16[16,128], index: 4, kind: input, shape index: {}]
  %s5 = inlined_call_operand.vmem [shape: f32[1,128], index: 5, kind: input, shape index: {}]
  %s6 = inlined_call_operand.vmem [shape: f32[1,128], index: 6, kind: input, shape index: {}]
  %s7 = inlined_call_operand.hbm [shape: f32[64,128], index: 7, kind: output, shape index: {}]
  %s8 = sld [smem:[#allocation0]]
  $region102: #{tpu_custom_call.1} parent=0
    _
  %s10 = ssub.s32 1, %s8
  %s11 = scalar_select 0, %s10, %s8
  $region1: #{tpu_custom_call.1} parent=0
    #allocation2 [shape = 'u8[262144]{0}', space=vmem, size = 0x40000, scoped, tag = 'input window, operand 0']
    #allocation3 [shape = 'u8[32768]{0}', space=vmem, size = 0x8000, scoped, tag = 'output window, operand 0']
    #allocation4 [shape = 's32[2]{0}', space=sflag, size = 0x8, scoped, tag = 'scoped memory for tpu_custom_call.1']
    %12 = vsyncpa [#allocation4], 0
    %s13 = scalar_lea.sflag [#allocation4], 1
    %14 = vsyncpa %s13, 0
    loop: start=0, step=1, limit=4
    $region2: #{tpu_custom_call.1} parent=1 // loop_pre_header
      _
    $region3: #{tpu_custom_call.1} parent=1 // loop_header
      %s16 = sphi 0, %s20
      %p17 = scmp.ge.s32.totalorder %s16, 4
      %s26 = sphi 0, %s28
      %s29 = sphi 0, %s26
      %s30 = sphi 0, %s29
      %s46 = sphi 0, %s30
      %s50 = sphi 0, %s50
      %s52 = sphi 0, %s50
      %s53 = sphi 0, %s52
      %s67 = sphi 0, %s53
      %s71 = sphi 0, %s71
      %s73 = sphi 0, %s71
      %s74 = sphi 0, %s73
      %s88 = sphi 0, %s74
      %s92 = sphi 0, %s92
      %s94 = sphi 0, %s92
      %s95 = sphi 0, %s94
      %s109 = sphi 0, %s95
      %s113 = sphi 0, %s113
      %s115 = sphi 0, %s113
      %s116 = sphi 0, %s115
      %s130 = sphi 0, %s116
      %s134 = sphi 0, %s134
      %s136 = sphi 0, %s134
      %s137 = sphi 0, %s136
      %s151 = sphi 0, %s137
      %s155 = sphi 0, %s155
      %s157 = sphi 0, %s155
      %s158 = sphi 0, %s157
      %s172 = sphi 0, %s158
      %s178 = sphi 0, %s180
      %s181 = sphi 0, %s178
      %s182 = sphi 0, %s181
      %s198 = sphi 0, %s182
    $region4: #{tpu_custom_call.1} parent=1 // loop_header_branch
      %19 = sbr.rel (%p17) target = $region8
    $region5: #{tpu_custom_call.1} parent=1 // loop_body
      %s21 = ssub.s32 %s16, 1
      %s22 = ssub.s32 %s16, 2
      %s23 = sadd.s32 %s16, 1
      %s24 = ssub.s32 %s16, %s23
      %p25 = scmp.eq.s32.totalorder %s24, 0
      %s27 = sadd.s32 %s26, 1
      %s28 = scalar_select %p25, %s26, %s27
      %p31 = pneg %p25
      %p32 = scmp.eq.s32.totalorder %s16, 1
      %p33 = por %p31, %p32
      %p34 = scmp.ne.s32.totalorder %s26, %s29
      %p35 = scmp.eq.s32.totalorder %s16, 0
      %p36 = por %p34, %p35
      %p37 = scmp.ne.s32.totalorder %s26, %s29
      %p38 = scmp.eq.s32.totalorder %s21, 1
      %p39 = por %p37, %p38
      %p40 = scmp.ne.s32.totalorder %s29, %s30
      %p41 = scmp.eq.s32.totalorder %s21, 0
      %p42 = por %p40, %p41
      %p43 = scmp.ne.s32.totalorder %s29, %s30
      %p44 = scmp.eq.s32.totalorder %s22, 1
      %p45 = por %p43, %p44
      %p47 = scmp.ne.s32.totalorder %s30, %s46
      %p48 = scmp.eq.s32.totalorder %s22, 0
      %p49 = por %p47, %p48
      %s51 = sadd.s32 %s50, 1
      %p54 = scmp.eq.s32.totalorder %s16, 1
      %p55 = scmp.ne.s32.totalorder %s50, %s52
      %p56 = scmp.eq.s32.totalorder %s16, 0
      %p57 = por %p55, %p56
      %p58 = scmp.ne.s32.totalorder %s50, %s52
      %p59 = scmp.eq.s32.totalorder %s21, 1
      %p60 = por %p58, %p59
      %p61 = scmp.ne.s32.totalorder %s52, %s53
      %p62 = scmp.eq.s32.totalorder %s21, 0
      %p63 = por %p61, %p62
      %p64 = scmp.ne.s32.totalorder %s52, %s53
      %p65 = scmp.eq.s32.totalorder %s22, 1
      %p66 = por %p64, %p65
      %p68 = scmp.ne.s32.totalorder %s53, %s67
      %p69 = scmp.eq.s32.totalorder %s22, 0
      %p70 = por %p68, %p69
      %s72 = sadd.s32 %s71, 1
      %p75 = scmp.eq.s32.totalorder %s16, 1
      %p76 = scmp.ne.s32.totalorder %s71, %s73
      %p77 = scmp.eq.s32.totalorder %s16, 0
      %p78 = por %p76, %p77
      %p79 = scmp.ne.s32.totalorder %s71, %s73
      %p80 = scmp.eq.s32.totalorder %s21, 1
      %p81 = por %p79, %p80
      %p82 = scmp.ne.s32.totalorder %s73, %s74
      %p83 = scmp.eq.s32.totalorder %s21, 0
      %p84 = por %p82, %p83
      %p85 = scmp.ne.s32.totalorder %s73, %s74
      %p86 = scmp.eq.s32.totalorder %s22, 1
      %p87 = por %p85, %p86
      %p89 = scmp.ne.s32.totalorder %s74, %s88
      %p90 = scmp.eq.s32.totalorder %s22, 0
      %p91 = por %p89, %p90
      %s93 = sadd.s32 %s92, 1
      %p96 = scmp.eq.s32.totalorder %s16, 1
      %p97 = scmp.ne.s32.totalorder %s92, %s94
      %p98 = scmp.eq.s32.totalorder %s16, 0
      %p99 = por %p97, %p98
      %p100 = scmp.ne.s32.totalorder %s92, %s94
      %p101 = scmp.eq.s32.totalorder %s21, 1
      %p102 = por %p100, %p101
      %p103 = scmp.ne.s32.totalorder %s94, %s95
      %p104 = scmp.eq.s32.totalorder %s21, 0
      %p105 = por %p103, %p104
      %p106 = scmp.ne.s32.totalorder %s94, %s95
      %p107 = scmp.eq.s32.totalorder %s22, 1
      %p108 = por %p106, %p107
      %p110 = scmp.ne.s32.totalorder %s95, %s109
      %p111 = scmp.eq.s32.totalorder %s22, 0
      %p112 = por %p110, %p111
      %s114 = sadd.s32 %s113, 1
      %p117 = scmp.eq.s32.totalorder %s16, 1
      %p118 = scmp.ne.s32.totalorder %s113, %s115
      %p119 = scmp.eq.s32.totalorder %s16, 0
      %p120 = por %p118, %p119
      %p121 = scmp.ne.s32.totalorder %s113, %s115
      %p122 = scmp.eq.s32.totalorder %s21, 1
      %p123 = por %p121, %p122
      %p124 = scmp.ne.s32.totalorder %s115, %s116
      %p125 = scmp.eq.s32.totalorder %s21, 0
      %p126 = por %p124, %p125
      %p127 = scmp.ne.s32.totalorder %s115, %s116
      %p128 = scmp.eq.s32.totalorder %s22, 1
      %p129 = por %p127, %p128
      %p131 = scmp.ne.s32.totalorder %s116, %s130
      %p132 = scmp.eq.s32.totalorder %s22, 0
      %p133 = por %p131, %p132
      %s135 = sadd.s32 %s134, 1
      %p138 = scmp.eq.s32.totalorder %s16, 1
      %p139 = scmp.ne.s32.totalorder %s134, %s136
      %p140 = scmp.eq.s32.totalorder %s16, 0
      %p141 = por %p139, %p140
      %p142 = scmp.ne.s32.totalorder %s134, %s136
      %p143 = scmp.eq.s32.totalorder %s21, 1
      %p144 = por %p142, %p143
      %p145 = scmp.ne.s32.totalorder %s136, %s137
      %p146 = scmp.eq.s32.totalorder %s21, 0
      %p147 = por %p145, %p146
      %p148 = scmp.ne.s32.totalorder %s136, %s137
      %p149 = scmp.eq.s32.totalorder %s22, 1
      %p150 = por %p148, %p149
      %p152 = scmp.ne.s32.totalorder %s137, %s151
      %p153 = scmp.eq.s32.totalorder %s22, 0
      %p154 = por %p152, %p153
      %s156 = sadd.s32 %s155, 1
      %p159 = scmp.eq.s32.totalorder %s16, 1
      %p160 = scmp.ne.s32.totalorder %s155, %s157
      %p161 = scmp.eq.s32.totalorder %s16, 0
      %p162 = por %p160, %p161
      %p163 = scmp.ne.s32.totalorder %s155, %s157
      %p164 = scmp.eq.s32.totalorder %s21, 1
      %p165 = por %p163, %p164
      %p166 = scmp.ne.s32.totalorder %s157, %s158
      %p167 = scmp.eq.s32.totalorder %s21, 0
      %p168 = por %p166, %p167
      %p169 = scmp.ne.s32.totalorder %s157, %s158
      %p170 = scmp.eq.s32.totalorder %s22, 1
      %p171 = por %p169, %p170
      %p173 = scmp.ne.s32.totalorder %s158, %s172
      %p174 = scmp.eq.s32.totalorder %s22, 0
      %p175 = por %p173, %p174
      %s176 = ssub.s32 %s16, %s23
      %p177 = scmp.eq.s32.totalorder %s176, 0
      %s179 = sadd.s32 %s178, 1
      %s180 = scalar_select %p177, %s178, %s179
      %p183 = pneg %p177
      %p184 = scmp.eq.s32.totalorder %s16, 1
      %p185 = por %p183, %p184
      %p186 = scmp.ne.s32.totalorder %s178, %s181
      %p187 = scmp.eq.s32.totalorder %s16, 0
      %p188 = por %p186, %p187
      %p189 = scmp.ne.s32.totalorder %s178, %s181
      %p190 = scmp.eq.s32.totalorder %s21, 1
      %p191 = por %p189, %p190
      %p192 = scmp.ne.s32.totalorder %s181, %s182
      %p193 = scmp.eq.s32.totalorder %s21, 0
      %p194 = por %p192, %p193
      %p195 = scmp.ne.s32.totalorder %s181, %s182
      %p196 = scmp.eq.s32.totalorder %s22, 1
      %p197 = por %p195, %p196
      %p199 = scmp.ne.s32.totalorder %s182, %s198
      %p200 = scmp.eq.s32.totalorder %s22, 0
      %p201 = por %p199, %p200
      %p202 = scmp.le.s32.totalorder 1, %s16
      %p203 = scmp.lt.s32.totalorder %s16, 3
      %p204 = pnand %p202, %p203
      %p205 = pneg %p204
      // Predicated region
      $region9: #{tpu_custom_call.1} parent=5 // pred_check
        _
      $region10: #{tpu_custom_call.1} parent=5 // pred_check_branch
        %207 = sbr.rel (%p204) target = $region12
      $region11: #{tpu_custom_call.1} parent=5 // pred_region
        %s208 = ssub.s32 %s16, 1
        // Predicated region
        $region13: #{tpu_custom_call.1} parent=11 // pred_check
          %p209 = pneg %p63
        $region14: #{tpu_custom_call.1} parent=11 // pred_check_branch
          %211 = sbr.rel (%p209) target = $region16
        $region15: #{tpu_custom_call.1} parent=11 // pred_region
          _
        $region16: #{tpu_custom_call.1} parent=11 // pred_fallthru
          _
        // Predicated region
        $region17: #{tpu_custom_call.1} parent=11 // pred_check
          %p212 = pneg %p84
        $region18: #{tpu_custom_call.1} parent=11 // pred_check_branch
          %214 = sbr.rel (%p212) target = $region20
        $region19: #{tpu_custom_call.1} parent=11 // pred_region
          _
        $region20: #{tpu_custom_call.1} parent=11 // pred_fallthru
          _
        // Predicated region
        $region21: #{tpu_custom_call.1} parent=11 // pred_check
          %p215 = pneg %p105
        $region22: #{tpu_custom_call.1} parent=11 // pred_check_branch
          %217 = sbr.rel (%p215) target = $region24
        $region23: #{tpu_custom_call.1} parent=11 // pred_region
          _
        $region24: #{tpu_custom_call.1} parent=11 // pred_fallthru
          _
        // Predicated region
        $region25: #{tpu_custom_call.1} parent=11 // pred_check
          %p218 = pneg %p126
        $region26: #{tpu_custom_call.1} parent=11 // pred_check_branch
          %220 = sbr.rel (%p218) target = $region28
        $region27: #{tpu_custom_call.1} parent=11 // pred_region
          _
        $region28: #{tpu_custom_call.1} parent=11 // pred_fallthru
          _
        // Predicated region
        $region29: #{tpu_custom_call.1} parent=11 // pred_check
          %p221 = pneg %p147
        $region30: #{tpu_custom_call.1} parent=11 // pred_check_branch
          %223 = sbr.rel (%p221) target = $region32
        $region31: #{tpu_custom_call.1} parent=11 // pred_region
          _
        $region32: #{tpu_custom_call.1} parent=11 // pred_fallthru
          _
        // Predicated region
        $region33: #{tpu_custom_call.1} parent=11 // pred_check
          %p224 = pneg %p168
        $region34: #{tpu_custom_call.1} parent=11 // pred_check_branch
          %226 = sbr.rel (%p224) target = $region36
        $region35: #{tpu_custom_call.1} parent=11 // pred_region
          _
        $region36: #{tpu_custom_call.1} parent=11 // pred_fallthru
          _
      $region12: #{tpu_custom_call.1} parent=5 // pred_fallthru
        _
      %p227 = scmp.lt.s32.totalorder %s16, 2
      // Predicated region
      $region37: #{tpu_custom_call.1} parent=5 // pred_check
        %p228 = pneg %p227
      $region38: #{tpu_custom_call.1} parent=5 // pred_check_branch
        %230 = sbr.rel (%p228) target = $region40
      $region39: #{tpu_custom_call.1} parent=5 // pred_region
        // Predicated region
        $region41: #{tpu_custom_call.1} parent=39 // pred_check
          %p231 = pneg %p36
        $region42: #{tpu_custom_call.1} parent=39 // pred_check_branch
          %233 = sbr.rel (%p231) target = $region44
        $region43: #{tpu_custom_call.1} parent=39 // pred_region
          %s234 = sand.u32 %s26, 1
          %s235 = sand.u32 %s26, 1
          %s236 = smul.addr %s235, 256
          %s237 = scalar_lea.vmem [#allocation2], %s236
          %s238 = smul.u32 4, %s16
          %s239 = smul.addr %s238, 4
          %s240 = scalar_lea.vmem %s0, %s239
          // Predicated region
          $region45: #{tpu_custom_call.1} parent=43 // pred_check
            _
          $region46: #{tpu_custom_call.1} parent=43 // pred_check_branch
            %242 = sbr.rel (0) target = $region48
          $region47: #{tpu_custom_call.1} parent=43 // pred_region
            // Predicated region
            $region49: #{tpu_custom_call.1} parent=47 // pred_check
              _
            $region50: #{tpu_custom_call.1} parent=47 // pred_check_branch
              %244 = sbr.rel target = $region52
            $region51: #{tpu_custom_call.1} parent=47 // pred_region
              // Predicated region
              $region64: #{tpu_custom_call.1} parent=51 // pred_check
                _
              $region65: #{tpu_custom_call.1} parent=51 // pred_check_branch
                %385 = sbr.rel (0) target = $region67
              $region66: #{tpu_custom_call.1} parent=51 // pred_region
                loop: start=0, step=1, limit=1
                $region68: #{tpu_custom_call.1} parent=66 // loop_pre_header
                  _
                $region69: #{tpu_custom_call.1} parent=66 // loop_header
                  %s387 = sphi 0, %s391
                  %p388 = scmp.ge.s32.totalorder %s387, 1
                  %s392 = sphi %s240, %s240
                  %s393 = sphi %s237, %s237
                $region70: #{tpu_custom_call.1} parent=66 // loop_header_branch
                  %390 = sbr.rel (%p388) target = $region74
                $region71: #{tpu_custom_call.1} parent=66 // loop_body
                  _
                $region72: #{tpu_custom_call.1} parent=66 // loop_footer
                  %s391 = sadd.s32 1, %s387
                $region73: #{tpu_custom_call.1} parent=66 // loop_footer_branch
                  %386 = sbr.rel target = $region69
                $region74: #{tpu_custom_call.1} parent=66 // loop_exit
                  _
                loop: start=0, step=1, limit=1
                $region75: #{tpu_custom_call.1} parent=66 // loop_pre_header
                  _
                $region76: #{tpu_custom_call.1} parent=66 // loop_header
                  %s396 = sphi 0, %s400
                  %p397 = scmp.ge.s32.totalorder %s396, 1
                  %s401 = sphi %s240, %s240
                  %s402 = sphi %s237, %s237
                $region77: #{tpu_custom_call.1} parent=66 // loop_header_branch
                  %399 = sbr.rel (%p397) target = $region81
                $region78: #{tpu_custom_call.1} parent=66 // loop_body
                  %v403 = vld [vmem:[%s401] sm:$0xf]
                  %404 = vst [vmem:[%s402] sm:$0xf] %v403
                  %v405 = vld [vmem:[%s401 + $0x4] sm:$0xf]
                  %406 = vst [vmem:[%s402 + $0x4] sm:$0xf] %v405
                  %v407 = vld [vmem:[%s401 + $0x8] sm:$0xf]
                  %408 = vst [vmem:[%s402 + $0x8] sm:$0xf] %v407
                  %v409 = vld [vmem:[%s401 + $0xc] sm:$0xf]
                  %410 = vst [vmem:[%s402 + $0xc] sm:$0xf] %v409
                  %v411 = vld [vmem:[%s401 + $0x20] sm:$0xf]
                  %412 = vst [vmem:[%s402 + $0x10] sm:$0xf] %v411
                  %v413 = vld [vmem:[%s401 + $0x24] sm:$0xf]
                  %414 = vst [vmem:[%s402 + $0x14] sm:$0xf] %v413
                  %v415 = vld [vmem:[%s401 + $0x28] sm:$0xf]
                  %416 = vst [vmem:[%s402 + $0x18] sm:$0xf] %v415
                  %v417 = vld [vmem:[%s401 + $0x2c] sm:$0xf]
                  %418 = vst [vmem:[%s402 + $0x1c] sm:$0xf] %v417
                  %v419 = vld [vmem:[%s401 + $0x40] sm:$0xf]
                  %420 = vst [vmem:[%s402 + $0x20] sm:$0xf] %v419
                  %v421 = vld [vmem:[%s401 + $0x44] sm:$0xf]
                  %422 = vst [vmem:[%s402 + $0x24] sm:$0xf] %v421
                  %v423 = vld [vmem:[%s401 + $0x48] sm:$0xf]
                  %424 = vst [vmem:[%s402 + $0x28] sm:$0xf] %v423
                  %v425 = vld [vmem:[%s401 + $0x4c] sm:$0xf]
                  %426 = vst [vmem:[%s402 + $0x2c] sm:$0xf] %v425
                  %v427 = vld [vmem:[%s401 + $0x60] sm:$0xf]
                  %428 = vst [vmem:[%s402 + $0x30] sm:$0xf] %v427
                  %v429 = vld [vmem:[%s401 + $0x64] sm:$0xf]
                  %430 = vst [vmem:[%s402 + $0x34] sm:$0xf] %v429
                  %v431 = vld [vmem:[%s401 + $0x68] sm:$0xf]
                  %432 = vst [vmem:[%s402 + $0x38] sm:$0xf] %v431
                  %v433 = vld [vmem:[%s401 + $0x6c] sm:$0xf]
                  %434 = vst [vmem:[%s402 + $0x3c] sm:$0xf] %v433
                  %v435 = vld [vmem:[%s401 + $0x80] sm:$0xf]
                  %436 = vst [vmem:[%s402 + $0x40] sm:$0xf] %v435
                  %v437 = vld [vmem:[%s401 + $0x84] sm:$0xf]
                  %438 = vst [vmem:[%s402 + $0x44] sm:$0xf] %v437
                  %v439 = vld [vmem:[%s401 + $0x88] sm:$0xf]
                  %440 = vst [vmem:[%s402 + $0x48] sm:$0xf] %v439
                  %v441 = vld [vmem:[%s401 + $0x8c] sm:$0xf]
                  %442 = vst [vmem:[%s402 + $0x4c] sm:$0xf] %v441
                  %v443 = vld [vmem:[%s401 + $0xa0] sm:$0xf]
                  %444 = vst [vmem:[%s402 + $0x50] sm:$0xf] %v443
                  %v445 = vld [vmem:[%s401 + $0xa4] sm:$0xf]
                  %446 = vst [vmem:[%s402 + $0x54] sm:$0xf] %v445
                  %v447 = vld [vmem:[%s401 + $0xa8] sm:$0xf]
                  %448 = vst [vmem:[%s402 + $0x58] sm:$0xf] %v447
                  %v449 = vld [vmem:[%s401 + $0xac] sm:$0xf]
                  %450 = vst [vmem:[%s402 + $0x5c] sm:$0xf] %v449
                  %v451 = vld [vmem:[%s401 + $0xc0] sm:$0xf]
                  %452 = vst [vmem:[%s402 + $0x60] sm:$0xf] %v451
                  %v453 = vld [vmem:[%s401 + $0xc4] sm:$0xf]
                  %454 = vst [vmem:[%s402 + $0x64] sm:$0xf] %v453
                  %v455 = vld [vmem:[%s401 + $0xc8] sm:$0xf]
                  %456 = vst [vmem:[%s402 + $0x68] sm:$0xf] %v455
                  %v457 = vld [vmem:[%s401 + $0xcc] sm:$0xf]
                  %458 = vst [vmem:[%s402 + $0x6c] sm:$0xf] %v457
                  %v459 = vld [vmem:[%s401 + $0xe0] sm:$0xf]
                  %460 = vst [vmem:[%s402 + $0x70] sm:$0xf] %v459
                  %v461 = vld [vmem:[%s401 + $0xe4] sm:$0xf]
                  %462 = vst [vmem:[%s402 + $0x74] sm:$0xf] %v461
                  %v463 = vld [vmem:[%s401 + $0xe8] sm:$0xf]
                  %464 = vst [vmem:[%s402 + $0x78] sm:$0xf] %v463
                  %v465 = vld [vmem:[%s401 + $0xec] sm:$0xf]
                  %466 = vst [vmem:[%s402 + $0x7c] sm:$0xf] %v465
                  %v467 = vld [vmem:[%s401 + $0x100] sm:$0xf]
                  %468 = vst [vmem:[%s402 + $0x80] sm:$0xf] %v467
                  %v469 = vld [vmem:[%s401 + $0x104] sm:$0xf]
                  %470 = vst [vmem:[%s402 + $0x84] sm:$0xf] %v469
                  %v471 = vld [vmem:[%s401 + $0x108] sm:$0xf]
                  %472 = vst [vmem:[%s402 + $0x88] sm:$0xf] %v471
                  %v473 = vld [vmem:[%s401 + $0x10c] sm:$0xf]
                  %474 = vst [vmem:[%s402 + $0x8c] sm:$0xf] %v473
                  %v475 = vld [vmem:[%s401 + $0x120] sm:$0xf]
                  %476 = vst [vmem:[%s402 + $0x90] sm:$0xf] %v475
                  %v477 = vld [vmem:[%s401 + $0x124] sm:$0xf]
                  %478 = vst [vmem:[%s402 + $0x94] sm:$0xf] %v477
                  %v479 = vld [vmem:[%s401 + $0x128] sm:$0xf]
                  %480 = vst [vmem:[%s402 + $0x98] sm:$0xf] %v479
                  %v481 = vld [vmem:[%s401 + $0x12c] sm:$0xf]
                  %482 = vst [vmem:[%s402 + $0x9c] sm:$0xf] %v481
                  %v483 = vld [vmem:[%s401 + $0x140] sm:$0xf]
                  %484 = vst [vmem:[%s402 + $0xa0] sm:$0xf] %v483
                  %v485 = vld [vmem:[%s401 + $0x144] sm:$0xf]
                  %486 = vst [vmem:[%s402 + $0xa4] sm:$0xf] %v485
                  %v487 = vld [vmem:[%s401 + $0x148] sm:$0xf]
                  %488 = vst [vmem:[%s402 + $0xa8] sm:$0xf] %v487
                  %v489 = vld [vmem:[%s401 + $0x14c] sm:$0xf]
                  %490 = vst [vmem:[%s402 + $0xac] sm:$0xf] %v489
                  %v491 = vld [vmem:[%s401 + $0x160] sm:$0xf]
                  %492 = vst [vmem:[%s402 + $0xb0] sm:$0xf] %v491
                  %v493 = vld [vmem:[%s401 + $0x164] sm:$0xf]
                  %494 = vst [vmem:[%s402 + $0xb4] sm:$0xf] %v493
                  %v495 = vld [vmem:[%s401 + $0x168] sm:$0xf]
                  %496 = vst [vmem:[%s402 + $0xb8] sm:$0xf] %v495
                  %v497 = vld [vmem:[%s401 + $0x16c] sm:$0xf]
                  %498 = vst [vmem:[%s402 + $0xbc] sm:$0xf] %v497
                  %v499 = vld [vmem:[%s401 + $0x180] sm:$0xf]
                  %500 = vst [vmem:[%s402 + $0xc0] sm:$0xf] %v499
                  %v501 = vld [vmem:[%s401 + $0x184] sm:$0xf]
                  %502 = vst [vmem:[%s402 + $0xc4] sm:$0xf] %v501
                  %v503 = vld [vmem:[%s401 + $0x188] sm:$0xf]
                  %504 = vst [vmem:[%s402 + $0xc8] sm:$0xf] %v503
                  %v505 = vld [vmem:[%s401 + $0x18c] sm:$0xf]
                  %506 = vst [vmem:[%s402 + $0xcc] sm:$0xf] %v505
                  %v507 = vld [vmem:[%s401 + $0x1a0] sm:$0xf]
                  %508 = vst [vmem:[%s402 + $0xd0] sm:$0xf] %v507
                  %v509 = vld [vmem:[%s401 + $0x1a4] sm:$0xf]
                  %510 = vst [vmem:[%s402 + $0xd4] sm:$0xf] %v509
                  %v511 = vld [vmem:[%s401 + $0x1a8] sm:$0xf]
                  %512 = vst [vmem:[%s402 + $0xd8] sm:$0xf] %v511
                  %v513 = vld [vmem:[%s401 + $0x1ac] sm:$0xf]
                  %514 = vst [vmem:[%s402 + $0xdc] sm:$0xf] %v513
                  %v515 = vld [vmem:[%s401 + $0x1c0] sm:$0xf]
                  %516 = vst [vmem:[%s402 + $0xe0] sm:$0xf] %v515
                  %v517 = vld [vmem:[%s401 + $0x1c4] sm:$0xf]
                  %518 = vst [vmem:[%s402 + $0xe4] sm:$0xf] %v517
                  %v519 = vld [vmem:[%s401 + $0x1c8] sm:$0xf]
                  %520 = vst [vmem:[%s402 + $0xe8] sm:$0xf] %v519
                  %v521 = vld [vmem:[%s401 + $0x1cc] sm:$0xf]
                  %522 = vst [vmem:[%s402 + $0xec] sm:$0xf] %v521
                  %v523 = vld [vmem:[%s401 + $0x1e0] sm:$0xf]
                  %524 = vst [vmem:[%s402 + $0xf0] sm:$0xf] %v523
                  %v525 = vld [vmem:[%s401 + $0x1e4] sm:$0xf]
                  %526 = vst [vmem:[%s402 + $0xf4] sm:$0xf] %v525
                  %v527 = vld [vmem:[%s401 + $0x1e8] sm:$0xf]
                  %528 = vst [vmem:[%s402 + $0xf8] sm:$0xf] %v527
                  %v529 = vld [vmem:[%s401 + $0x1ec] sm:$0xf]
                  %530 = vst [vmem:[%s402 + $0xfc] sm:$0xf] %v529
                $region79: #{tpu_custom_call.1} parent=66 // loop_footer
                  %s400 = sadd.s32 1, %s396
                $region80: #{tpu_custom_call.1} parent=66 // loop_footer_branch
                  %395 = sbr.rel target = $region76
                $region81: #{tpu_custom_call.1} parent=66 // loop_exit
                  _
              $region67: #{tpu_custom_call.1} parent=51 // pred_fallthru
                _
            $region52: #{tpu_custom_call.1} parent=47 // pred_fallthru
              _
            // Predicated region
            $region53: #{tpu_custom_call.1} parent=47 // pred_check
              _
            $region54: #{tpu_custom_call.1} parent=47 // pred_check_branch
              %246 = sbr.rel (0) target = $region56
            $region55: #{tpu_custom_call.1} parent=47 // pred_region
              loop: start=0, step=1, limit=1
              $region57: #{tpu_custom_call.1} parent=55 // loop_pre_header
                _
              $region58: #{tpu_custom_call.1} parent=55 // loop_header
                %s249 = sphi 0, %s253
                %p250 = scmp.ge.s32.totalorder %s249, 1
                %s254 = sphi %s240, %s240
                %s255 = sphi %s237, %s237
              $region59: #{tpu_custom_call.1} parent=55 // loop_header_branch
                %252 = sbr.rel (%p250) target = $region63
              $region60: #{tpu_custom_call.1} parent=55 // loop_body
                %v256 = vld [vmem:[%s254] sm:$0xf]
                %257 = vst [vmem:[%s255] sm:$0xf] %v256
                %v258 = vld [vmem:[%s254 + $0x4] sm:$0xf]
                %259 = vst [vmem:[%s255 + $0x4] sm:$0xf] %v258
                %v260 = vld [vmem:[%s254 + $0x8] sm:$0xf]
                %261 = vst [vmem:[%s255 + $0x8] sm:$0xf] %v260
                %v262 = vld [vmem:[%s254 + $0xc] sm:$0xf]
                %263 = vst [vmem:[%s255 + $0xc] sm:$0xf] %v262
                %v264 = vld [vmem:[%s254 + $0x20] sm:$0xf]
                %265 = vst [vmem:[%s255 + $0x10] sm:$0xf] %v264
                %v266 = vld [vmem:[%s254 + $0x24] sm:$0xf]
                %267 = vst [vmem:[%s255 + $0x14] sm:$0xf] %v266
                %v268 = vld [vmem:[%s254 + $0x28] sm:$0xf]
                %269 = vst [vmem:[%s255 + $0x18] sm:$0xf] %v268
                %v270 = vld [vmem:[%s254 + $0x2c] sm:$0xf]
                %271 = vst [vmem:[%s255 + $0x1c] sm:$0xf] %v270
                %v272 = vld [vmem:[%s254 + $0x40] sm:$0xf]
                %273 = vst [vmem:[%s255 + $0x20] sm:$0xf] %v272
                %v274 = vld [vmem:[%s254 + $0x44] sm:$0xf]
                %275 = vst [vmem:[%s255 + $0x24] sm:$0xf] %v274
                %v276 = vld [vmem:[%s254 + $0x48] sm:$0xf]
                %277 = vst [vmem:[%s255 + $0x28] sm:$0xf] %v276
                %v278 = vld [vmem:[%s254 + $0x4c] sm:$0xf]
                %279 = vst [vmem:[%s255 + $0x2c] sm:$0xf] %v278
                %v280 = vld [vmem:[%s254 + $0x60] sm:$0xf]
                %281 = vst [vmem:[%s255 + $0x30] sm:$0xf] %v280
                %v282 = vld [vmem:[%s254 + $0x64] sm:$0xf]
                %283 = vst [vmem:[%s255 + $0x34] sm:$0xf] %v282
                %v284 = vld [vmem:[%s254 + $0x68] sm:$0xf]
                %285 = vst [vmem:[%s255 + $0x38] sm:$0xf] %v284
                %v286 = vld [vmem:[%s254 + $0x6c] sm:$0xf]
                %287 = vst [vmem:[%s255 + $0x3c] sm:$0xf] %v286
                %v288 = vld [vmem:[%s254 + $0x80] sm:$0xf]
                %289 = vst [vmem:[%s255 + $0x40] sm:$0xf] %v288
                %v290 = vld [vmem:[%s254 + $0x84] sm:$0xf]
                %291 = vst [vmem:[%s255 + $0x44] sm:$0xf] %v290
                %v292 = vld [vmem:[%s254 + $0x88] sm:$0xf]
                %293 = vst [vmem:[%s255 + $0x48] sm:$0xf] %v292
                %v294 = vld [vmem:[%s254 + $0x8c] sm:$0xf]
                %295 = vst [vmem:[%s255 + $0x4c] sm:$0xf] %v294
                %v296 = vld [vmem:[%s254 + $0xa0] sm:$0xf]
                %297 = vst [vmem:[%s255 + $0x50] sm:$0xf] %v296
                %v298 = vld [vmem:[%s254 + $0xa4] sm:$0xf]
                %299 = vst [vmem:[%s255 + $0x54] sm:$0xf] %v298
                %v300 = vld [vmem:[%s254 + $0xa8] sm:$0xf]
                %301 = vst [vmem:[%s255 + $0x58] sm:$0xf] %v300
                %v302 = vld [vmem:[%s254 + $0xac] sm:$0xf]
                %303 = vst [vmem:[%s255 + $0x5c] sm:$0xf] %v302
                %v304 = vld [vmem:[%s254 + $0xc0] sm:$0xf]
                %305 = vst [vmem:[%s255 + $0x60] sm:$0xf] %v304
                %v306 = vld [vmem:[%s254 + $0xc4] sm:$0xf]
                %307 = vst [vmem:[%s255 + $0x64] sm:$0xf] %v306
                %v308 = vld [vmem:[%s254 + $0xc8] sm:$0xf]
                %309 = vst [vmem:[%s255 + $0x68] sm:$0xf] %v308
                %v310 = vld [vmem:[%s254 + $0xcc] sm:$0xf]
                %311 = vst [vmem:[%s255 + $0x6c] sm:$0xf] %v310
                %v312 = vld [vmem:[%s254 + $0xe0] sm:$0xf]
                %313 = vst [vmem:[%s255 + $0x70] sm:$0xf] %v312
                %v314 = vld [vmem:[%s254 + $0xe4] sm:$0xf]
                %315 = vst [vmem:[%s255 + $0x74] sm:$0xf] %v314
                %v316 = vld [vmem:[%s254 + $0xe8] sm:$0xf]
                %317 = vst [vmem:[%s255 + $0x78] sm:$0xf] %v316
                %v318 = vld [vmem:[%s254 + $0xec] sm:$0xf]
                %319 = vst [vmem:[%s255 + $0x7c] sm:$0xf] %v318
                %v320 = vld [vmem:[%s254 + $0x100] sm:$0xf]
                %321 = vst [vmem:[%s255 + $0x80] sm:$0xf] %v320
                %v322 = vld [vmem:[%s254 + $0x104] sm:$0xf]
                %323 = vst [vmem:[%s255 + $0x84] sm:$0xf] %v322
                %v324 = vld [vmem:[%s254 + $0x108] sm:$0xf]
                %325 = vst [vmem:[%s255 + $0x88] sm:$0xf] %v324
                %v326 = vld [vmem:[%s254 + $0x10c] sm:$0xf]
                %327 = vst [vmem:[%s255 + $0x8c] sm:$0xf] %v326
                %v328 = vld [vmem:[%s254 + $0x120] sm:$0xf]
                %329 = vst [vmem:[%s255 + $0x90] sm:$0xf] %v328
                %v330 = vld [vmem:[%s254 + $0x124] sm:$0xf]
                %331 = vst [vmem:[%s255 + $0x94] sm:$0xf] %v330
                %v332 = vld [vmem:[%s254 + $0x128] sm:$0xf]
                %333 = vst [vmem:[%s255 + $0x98] sm:$0xf] %v332
                %v334 = vld [vmem:[%s254 + $0x12c] sm:$0xf]
                %335 = vst [vmem:[%s255 + $0x9c] sm:$0xf] %v334
                %v336 = vld [vmem:[%s254 + $0x140] sm:$0xf]
                %337 = vst [vmem:[%s255 + $0xa0] sm:$0xf] %v336
                %v338 = vld [vmem:[%s254 + $0x144] sm:$0xf]
                %339 = vst [vmem:[%s255 + $0xa4] sm:$0xf] %v338
                %v340 = vld [vmem:[%s254 + $0x148] sm:$0xf]
                %341 = vst [vmem:[%s255 + $0xa8] sm:$0xf] %v340
                %v342 = vld [vmem:[%s254 + $0x14c] sm:$0xf]
                %343 = vst [vmem:[%s255 + $0xac] sm:$0xf] %v342
                %v344 = vld [vmem:[%s254 + $0x160] sm:$0xf]
                %345 = vst [vmem:[%s255 + $0xb0] sm:$0xf] %v344
                %v346 = vld [vmem:[%s254 + $0x164] sm:$0xf]
                %347 = vst [vmem:[%s255 + $0xb4] sm:$0xf] %v346
                %v348 = vld [vmem:[%s254 + $0x168] sm:$0xf]
                %349 = vst [vmem:[%s255 + $0xb8] sm:$0xf] %v348
                %v350 = vld [vmem:[%s254 + $0x16c] sm:$0xf]
                %351 = vst [vmem:[%s255 + $0xbc] sm:$0xf] %v350
                %v352 = vld [vmem:[%s254 + $0x180] sm:$0xf]
                %353 = vst [vmem:[%s255 + $0xc0] sm:$0xf] %v352
                %v354 = vld [vmem:[%s254 + $0x184] sm:$0xf]
                %355 = vst [vmem:[%s255 + $0xc4] sm:$0xf] %v354
                %v356 = vld [vmem:[%s254 + $0x188] sm:$0xf]
                %357 = vst [vmem:[%s255 + $0xc8] sm:$0xf] %v356
                %v358 = vld [vmem:[%s254 + $0x18c] sm:$0xf]
                %359 = vst [vmem:[%s255 + $0xcc] sm:$0xf] %v358
                %v360 = vld [vmem:[%s254 + $0x1a0] sm:$0xf]
                %361 = vst [vmem:[%s255 + $0xd0] sm:$0xf] %v360
                %v362 = vld [vmem:[%s254 + $0x1a4] sm:$0xf]
                %363 = vst [vmem:[%s255 + $0xd4] sm:$0xf] %v362
                %v364 = vld [vmem:[%s254 + $0x1a8] sm:$0xf]
                %365 = vst [vmem:[%s255 + $0xd8] sm:$0xf] %v364
                %v366 = vld [vmem:[%s254 + $0x1ac] sm:$0xf]
                %367 = vst [vmem:[%s255 + $0xdc] sm:$0xf] %v366
                %v368 = vld [vmem:[%s254 + $0x1c0] sm:$0xf]
                %369 = vst [vmem:[%s255 + $0xe0] sm:$0xf] %v368
                %v370 = vld [vmem:[%s254 + $0x1c4] sm:$0xf]
                %371 = vst [vmem:[%s255 + $0xe4] sm:$0xf] %v370
                %v372 = vld [vmem:[%s254 + $0x1c8] sm:$0xf]
                %373 = vst [vmem:[%s255 + $0xe8] sm:$0xf] %v372
                %v374 = vld [vmem:[%s254 + $0x1cc] sm:$0xf]
                %375 = vst [vmem:[%s255 + $0xec] sm:$0xf] %v374
                %v376 = vld [vmem:[%s254 + $0x1e0] sm:$0xf]
                %377 = vst [vmem:[%s255 + $0xf0] sm:$0xf] %v376
                %v378 = vld [vmem:[%s254 + $0x1e4] sm:$0xf]
                %379 = vst [vmem:[%s255 + $0xf4] sm:$0xf] %v378
                %v380 = vld [vmem:[%s254 + $0x1e8] sm:$0xf]
                %381 = vst [vmem:[%s255 + $0xf8] sm:$0xf] %v380
                %v382 = vld [vmem:[%s254 + $0x1ec] sm:$0xf]
                %383 = vst [vmem:[%s255 + $0xfc] sm:$0xf] %v382
              $region61: #{tpu_custom_call.1} parent=55 // loop_footer
                %s253 = sadd.s32 1, %s249
              $region62: #{tpu_custom_call.1} parent=55 // loop_footer_branch
                %248 = sbr.rel target = $region58
              $region63: #{tpu_custom_call.1} parent=55 // loop_exit
                _
            $region56: #{tpu_custom_call.1} parent=47 // pred_fallthru
              _
          $region48: #{tpu_custom_call.1} parent=43 // pred_fallthru
            _
          %531 = vnop
        $region44: #{tpu_custom_call.1} parent=39 // pred_fallthru
          _
      $region40: #{tpu_custom_call.1} parent=5 // pred_fallthru
        _
      %p532 = scmp.le.s32.totalorder 1, %s16
      %p533 = scmp.lt.s32.totalorder %s16, 3
      %p534 = pnand %p532, %p533
      %p535 = pneg %p534
      // Predicated region
      $region82: #{tpu_custom_call.1} parent=5 // pred_check
        _
      $region83: #{tpu_custom_call.1} parent=5 // pred_check_branch
        %537 = sbr.rel (%p534) target = $region85
      $region84: #{tpu_custom_call.1} parent=5 // pred_region
        %s538 = ssub.s32 %s16, 1
        %s539 = sand.u32 %s29, 1
        %s540 = sand.u32 %s29, 1
        %s541 = smul.addr %s540, 256
        %s542 = scalar_lea.vmem [#allocation2], %s541
        // Predicated region
        $region86: #{tpu_custom_call.1} parent=84 // pred_check
          %p543 = pneg %p42
        $region87: #{tpu_custom_call.1} parent=84 // pred_check_branch
          %545 = sbr.rel (%p543) target = $region89
        $region88: #{tpu_custom_call.1} parent=84 // pred_region
          _
        $region89: #{tpu_custom_call.1} parent=84 // pred_fallthru
          _
        %s546 = sand.u32 %s29, 1
        %s547 = sand.u32 %s29, 1
        %s548 = smul.addr %s547, 256
        %s549 = scalar_lea.vmem [#allocation2], %s548
        %p550 = pneg %p42
        %p551 = pneg %p39
        %p552 = pneg %p63
        %p553 = pneg %p60
        %p554 = pneg %p84
        %p555 = pneg %p81
        %p556 = pneg %p105
        %p557 = pneg %p102
        %p558 = pneg %p126
        %p559 = pneg %p123
        %p560 = pneg %p147
        %p561 = pneg %p144
        %p562 = pneg %p168
        %p563 = pneg %p165
        %p564 = pneg %p194
        %p565 = pneg %p191
        %s566 = sand.u32 %s181, 1
        %s567 = scalar_lea.sflag [#allocation4], %s566
        %s568 = sand.u32 %s181, 1
        %s569 = smul.addr %s568, 32
        %s570 = scalar_lea.vmem [#allocation3], %s569
        %s571 = smul.u32 4, %s21
        %s572 = smul.u32 4, %s21
        %v574 = vld [vmem:[%s542] sm:$0xf]
        %v575 = vld [vmem:[%s542 + $0x4] sm:$0xf]
        %v576 = vld [vmem:[%s542 + $0x8] sm:$0xf]
        %v577 = vld [vmem:[%s542 + $0xc] sm:$0xf]
        %v578 = vld [vmem:[%s542 + $0x10] sm:$0xf]
        %v579 = vld [vmem:[%s542 + $0x14] sm:$0xf]
        %v580 = vld [vmem:[%s542 + $0x18] sm:$0xf]
        %v581 = vld [vmem:[%s542 + $0x1c] sm:$0xf]
        %v582 = vld [vmem:[%s542 + $0x20] sm:$0xf]
        %v583 = vld [vmem:[%s542 + $0x24] sm:$0xf]
        %v584 = vld [vmem:[%s542 + $0x28] sm:$0xf]
        %v585 = vld [vmem:[%s542 + $0x2c] sm:$0xf]
        %v586 = vld [vmem:[%s542 + $0x30] sm:$0xf]
        %v587 = vld [vmem:[%s542 + $0x34] sm:$0xf]
        %v588 = vld [vmem:[%s542 + $0x38] sm:$0xf]
        %v589 = vld [vmem:[%s542 + $0x3c] sm:$0xf]
        %v590 = vld [vmem:[%s542 + $0x40] sm:$0xf]
        %v591 = vld [vmem:[%s542 + $0x44] sm:$0xf]
        %v592 = vld [vmem:[%s542 + $0x48] sm:$0xf]
        %v593 = vld [vmem:[%s542 + $0x4c] sm:$0xf]
        %v594 = vld [vmem:[%s542 + $0x50] sm:$0xf]
        %v595 = vld [vmem:[%s542 + $0x54] sm:$0xf]
        %v596 = vld [vmem:[%s542 + $0x58] sm:$0xf]
        %v597 = vld [vmem:[%s542 + $0x5c] sm:$0xf]
        %v598 = vld [vmem:[%s542 + $0x60] sm:$0xf]
        %v599 = vld [vmem:[%s542 + $0x64] sm:$0xf]
        %v600 = vld [vmem:[%s542 + $0x68] sm:$0xf]
        %v601 = vld [vmem:[%s542 + $0x6c] sm:$0xf]
        %v602 = vld [vmem:[%s542 + $0x70] sm:$0xf]
        %v603 = vld [vmem:[%s542 + $0x74] sm:$0xf]
        %v604 = vld [vmem:[%s542 + $0x78] sm:$0xf]
        %v605 = vld [vmem:[%s542 + $0x7c] sm:$0xf]
        %v606 = vld [vmem:[%s542 + $0x80] sm:$0xf]
        %v607 = vld [vmem:[%s542 + $0x84] sm:$0xf]
        %v608 = vld [vmem:[%s542 + $0x88] sm:$0xf]
        %v609 = vld [vmem:[%s542 + $0x8c] sm:$0xf]
        %v610 = vld [vmem:[%s542 + $0x90] sm:$0xf]
        %v611 = vld [vmem:[%s542 + $0x94] sm:$0xf]
        %v612 = vld [vmem:[%s542 + $0x98] sm:$0xf]
        %v613 = vld [vmem:[%s542 + $0x9c] sm:$0xf]
        %v614 = vld [vmem:[%s542 + $0xa0] sm:$0xf]
        %v615 = vld [vmem:[%s542 + $0xa4] sm:$0xf]
        %v616 = vld [vmem:[%s542 + $0xa8] sm:$0xf]
        %v617 = vld [vmem:[%s542 + $0xac] sm:$0xf]
        %v618 = vld [vmem:[%s542 + $0xb0] sm:$0xf]
        %v619 = vld [vmem:[%s542 + $0xb4] sm:$0xf]
        %v620 = vld [vmem:[%s542 + $0xb8] sm:$0xf]
        %v621 = vld [vmem:[%s542 + $0xbc] sm:$0xf]
        %v622 = vld [vmem:[%s542 + $0xc0] sm:$0xf]
        %v623 = vld [vmem:[%s542 + $0xc4] sm:$0xf]
        %v624 = vld [vmem:[%s542 + $0xc8] sm:$0xf]
        %v625 = vld [vmem:[%s542 + $0xcc] sm:$0xf]
        %v626 = vld [vmem:[%s542 + $0xd0] sm:$0xf]
        %v627 = vld [vmem:[%s542 + $0xd4] sm:$0xf]
        %v628 = vld [vmem:[%s542 + $0xd8] sm:$0xf]
        %v629 = vld [vmem:[%s542 + $0xdc] sm:$0xf]
        %v630 = vld [vmem:[%s542 + $0xe0] sm:$0xf]
        %v631 = vld [vmem:[%s542 + $0xe4] sm:$0xf]
        %v632 = vld [vmem:[%s542 + $0xe8] sm:$0xf]
        %v633 = vld [vmem:[%s542 + $0xec] sm:$0xf]
        %v634 = vld [vmem:[%s542 + $0xf0] sm:$0xf]
        %v635 = vld [vmem:[%s542 + $0xf4] sm:$0xf]
        %v636 = vld [vmem:[%s542 + $0xf8] sm:$0xf]
        %v637 = vld [vmem:[%s542 + $0xfc] sm:$0xf]
        %v638 = vld [vmem:[%s1] sm:$0xf]
        %v703 = vunpack.c.l.b16 %v574
        %v704 = vunpack.c.l.b16 %v575
        %v705 = vunpack.c.l.b16 %v576
        %v706 = vunpack.c.l.b16 %v577
        %v707 = vunpack.c.l.b16 %v578
        %v708 = vunpack.c.l.b16 %v579
        %v709 = vunpack.c.l.b16 %v580
        %v710 = vunpack.c.l.b16 %v581
        %v711 = vunpack.c.l.b16 %v582
        %v712 = vunpack.c.l.b16 %v583
        %v713 = vunpack.c.l.b16 %v584
        %v714 = vunpack.c.l.b16 %v585
        %v715 = vunpack.c.l.b16 %v586
        %v716 = vunpack.c.l.b16 %v587
        %v717 = vunpack.c.l.b16 %v588
        %v718 = vunpack.c.l.b16 %v589
        %v719 = vunpack.c.l.b16 %v590
        %v720 = vunpack.c.l.b16 %v591
        %v721 = vunpack.c.l.b16 %v592
        %v722 = vunpack.c.l.b16 %v593
        %v723 = vunpack.c.l.b16 %v594
        %v724 = vunpack.c.l.b16 %v595
        %v725 = vunpack.c.l.b16 %v596
        %v726 = vunpack.c.l.b16 %v597
        %v727 = vunpack.c.l.b16 %v598
        %v728 = vunpack.c.l.b16 %v599
        %v729 = vunpack.c.l.b16 %v600
        %v730 = vunpack.c.l.b16 %v601
        %v731 = vunpack.c.l.b16 %v602
        %v732 = vunpack.c.l.b16 %v603
        %v733 = vunpack.c.l.b16 %v604
        %v734 = vunpack.c.l.b16 %v605
        %v735 = vunpack.c.l.b16 %v606
        %v736 = vunpack.c.l.b16 %v607
        %v737 = vunpack.c.l.b16 %v608
        %v738 = vunpack.c.l.b16 %v609
        %v739 = vunpack.c.l.b16 %v610
        %v740 = vunpack.c.l.b16 %v611
        %v741 = vunpack.c.l.b16 %v612
        %v742 = vunpack.c.l.b16 %v613
        %v743 = vunpack.c.l.b16 %v614
        %v744 = vunpack.c.l.b16 %v615
        %v745 = vunpack.c.l.b16 %v616
        %v746 = vunpack.c.l.b16 %v617
        %v747 = vunpack.c.l.b16 %v618
        %v748 = vunpack.c.l.b16 %v619
        %v749 = vunpack.c.l.b16 %v620
        %v750 = vunpack.c.l.b16 %v621
        %v751 = vunpack.c.l.b16 %v622
        %v752 = vunpack.c.l.b16 %v623
        %v753 = vunpack.c.l.b16 %v624
        %v754 = vunpack.c.l.b16 %v625
        %v755 = vunpack.c.l.b16 %v626
        %v756 = vunpack.c.l.b16 %v627
        %v757 = vunpack.c.l.b16 %v628
        %v758 = vunpack.c.l.b16 %v629
        %v759 = vunpack.c.l.b16 %v630
        %v760 = vunpack.c.l.b16 %v631
        %v761 = vunpack.c.l.b16 %v632
        %v762 = vunpack.c.l.b16 %v633
        %v763 = vunpack.c.l.b16 %v634
        %v764 = vunpack.c.l.b16 %v635
        %v765 = vunpack.c.l.b16 %v636
        %v766 = vunpack.c.l.b16 %v637
        %v767 = vpack.c.b16 %v704, %v703
        %v768 = vpack.c.b16 %v706, %v705
        %v769 = vpack.c.b16 %v708, %v707
        %v770 = vpack.c.b16 %v710, %v709
        %v771 = vpack.c.b16 %v712, %v711
        %v772 = vpack.c.b16 %v714, %v713
        %v773 = vpack.c.b16 %v716, %v715
        %v774 = vpack.c.b16 %v718, %v717
        %v775 = vpack.c.b16 %v720, %v719
        %v776 = vpack.c.b16 %v722, %v721
        %v777 = vpack.c.b16 %v724, %v723
        %v778 = vpack.c.b16 %v726, %v725
        %v779 = vpack.c.b16 %v728, %v727
        %v780 = vpack.c.b16 %v730, %v729
        %v781 = vpack.c.b16 %v732, %v731
        %v782 = vpack.c.b16 %v734, %v733
        %v783 = vpack.c.b16 %v736, %v735
        %v784 = vpack.c.b16 %v738, %v737
        %v785 = vpack.c.b16 %v740, %v739
        %v786 = vpack.c.b16 %v742, %v741
        %v787 = vpack.c.b16 %v744, %v743
        %v788 = vpack.c.b16 %v746, %v745
        %v789 = vpack.c.b16 %v748, %v747
        %v790 = vpack.c.b16 %v750, %v749
        %v791 = vpack.c.b16 %v752, %v751
        %v792 = vpack.c.b16 %v754, %v753
        %v793 = vpack.c.b16 %v756, %v755
        %v794 = vpack.c.b16 %v758, %v757
        %v795 = vpack.c.b16 %v760, %v759
        %v796 = vpack.c.b16 %v762, %v761
        %v797 = vpack.c.b16 %v764, %v763
        %v798 = vpack.c.b16 %v766, %v765
        %vm799 = vcmask 56320
        %v801 = vsel %vm799, %v767, 0
        %v804 = vsel %vm799, %v768, 0
        %v807 = vsel %vm799, %v769, 0
        %v810 = vsel %vm799, %v770, 0
        %v813 = vsel %vm799, %v771, 0
        %v816 = vsel %vm799, %v772, 0
        %v819 = vsel %vm799, %v773, 0
        %v822 = vsel %vm799, %v774, 0
        %v825 = vsel %vm799, %v775, 0
        %v828 = vsel %vm799, %v776, 0
        %v831 = vsel %vm799, %v777, 0
        %v834 = vsel %vm799, %v778, 0
        %v837 = vsel %vm799, %v779, 0
        %v840 = vsel %vm799, %v780, 0
        %v843 = vsel %vm799, %v781, 0
        %v846 = vsel %vm799, %v782, 0
        %v849 = vsel %vm799, %v783, 0
        %v852 = vsel %vm799, %v784, 0
        %v855 = vsel %vm799, %v785, 0
        %v858 = vsel %vm799, %v786, 0
        %v861 = vsel %vm799, %v787, 0
        %v864 = vsel %vm799, %v788, 0
        %v867 = vsel %vm799, %v789, 0
        %v870 = vsel %vm799, %v790, 0
        %v873 = vsel %vm799, %v791, 0
        %v876 = vsel %vm799, %v792, 0
        %v879 = vsel %vm799, %v793, 0
        %v882 = vsel %vm799, %v794, 0
        %v885 = vsel %vm799, %v795, 0
        %v888 = vsel %vm799, %v796, 0
        %v891 = vsel %vm799, %v797, 0
        %v894 = vsel %vm799, %v798, 0
        %vm896 = vcmask 1042432
        %vm897 = vcmask 1043456
        %v898 = vsel %vm896, 4294967295, 65535
        %v899 = vsel %vm897, %v898, 0
        %v901 = vand.u32 %v638, %v899
        %903 = vmatprep.subr.bf16.mxu0 0
        %904 = vmatpush1.bf16.msra.mxu0 %v901
        %905 = vmatprep.subr.bf16.mxu0 0
        %906 = vmatpush1.bf16.msra.mxu0 0
        %907 = vmatprep.subr.bf16.mxu0 0
        %908 = vmatpush1.bf16.msra.mxu0 0
        %909 = vmatprep.subr.bf16.mxu0 0
        %910 = vmatpush1.bf16.msra.mxu0 0
        %911 = vmatprep.subr.bf16.mxu0 0
        %912 = vmatpush1.bf16.msra.mxu0 0
        %913 = vmatprep.subr.bf16.mxu0 0
        %914 = vmatpush1.bf16.msra.mxu0 0
        %915 = vmatprep.subr.bf16.mxu0 0
        %916 = vmatpush1.bf16.msra.mxu0 0
        %917 = vmatprep.subr.bf16.mxu0 0
        %918 = vmatpush1.bf16.msra.mxu0 0
        %919 = vmatprep.subr.bf16.mxu0 0
        %920 = vmatpush1.bf16.msra.mxu0 0
        %921 = vmatprep.subr.bf16.mxu0 0
        %922 = vmatpush1.bf16.msra.mxu0 0
        %923 = vmatprep.subr.bf16.mxu0 0
        %924 = vmatpush1.bf16.msra.mxu0 0
        %925 = vmatprep.subr.bf16.mxu0 0
        %926 = vmatpush1.bf16.msra.mxu0 0
        %927 = vmatprep.subr.bf16.mxu0 0
        %928 = vmatpush1.bf16.msra.mxu0 0
        %929 = vmatprep.subr.bf16.mxu0 0
        %930 = vmatpush1.bf16.msra.mxu0 0
        %931 = vmatprep.subr.bf16.mxu0 0
        %932 = vmatpush1.bf16.msra.mxu0 0
        %933 = vmatprep.subr.bf16.mxu0 0
        %934 = vmatpush1.bf16.msra.mxu0 0
        %935 = vmatprep.mubr.bf16.mxu0 0
        %936 = vmatmul.mubr.bf16.gmra.mrb[0].mxu0 %v801
        %v937 = vpop.f32.mrb[0].mxu0
        %v938 = vadd.f32 0.0, %v937
        %v939 = vpop.f32.mrb[0].mxu0
        %v940 = vpop.f32.mrb[0].mxu0
        %v941 = vadd.f32 0.0, %v940
        %v942 = vpop.f32.mrb[0].mxu0
        %943 = vmatprep.mubr.bf16.mxu0 0
        %944 = vmatmul.mubr.bf16.gmra.mrb[0].mxu0 %v804
        %v945 = vpop.f32.mrb[0].mxu0
        %v946 = vadd.f32 0.0, %v945
        %v947 = vpop.f32.mrb[0].mxu0
        %v948 = vpop.f32.mrb[0].mxu0
        %v949 = vadd.f32 0.0, %v948
        %v950 = vpop.f32.mrb[0].mxu0
        %951 = vmatprep.mubr.bf16.mxu0 0
        %952 = vmatmul.mubr.bf16.gmra.mrb[0].mxu0 %v807
        %v953 = vpop.f32.mrb[0].mxu0
        %v954 = vadd.f32 0.0, %v953
        %v955 = vpop.f32.mrb[0].mxu0
        %v956 = vpop.f32.mrb[0].mxu0
        %v957 = vadd.f32 0.0, %v956
        %v958 = vpop.f32.mrb[0].mxu0
        %959 = vmatprep.mubr.bf16.mxu0 0
        %960 = vmatmul.mubr.bf16.gmra.mrb[0].mxu0 %v810
        %v961 = vpop.f32.mrb[0].mxu0
        %v962 = vadd.f32 0.0, %v961
        %v963 = vpop.f32.mrb[0].mxu0
        %v964 = vpop.f32.mrb[0].mxu0
        %v965 = vadd.f32 0.0, %v964
        %v966 = vpop.f32.mrb[0].mxu0
        %967 = vmatprep.mubr.bf16.mxu0 0
        %968 = vmatmul.mubr.bf16.gmra.mrb[0].mxu0 %v813
        %v969 = vpop.f32.mrb[0].mxu0
        %v970 = vadd.f32 0.0, %v969
        %v971 = vpop.f32.mrb[0].mxu0
        %v972 = vpop.f32.mrb[0].mxu0
        %v973 = vadd.f32 0.0, %v972
        %v974 = vpop.f32.mrb[0].mxu0
        %975 = vmatprep.mubr.bf16.mxu0 0
        %976 = vmatmul.mubr.bf16.gmra.mrb[0].mxu0 %v816
        %v977 = vpop.f32.mrb[0].mxu0
        %v978 = vadd.f32 0.0, %v977
        %v979 = vpop.f32.mrb[0].mxu0
        %v980 = vpop.f32.mrb[0].mxu0
        %v981 = vadd.f32 0.0, %v980
        %v982 = vpop.f32.mrb[0].mxu0
        %983 = vmatprep.mubr.bf16.mxu0 0
        %984 = vmatmul.mubr.bf16.gmra.mrb[0].mxu0 %v819
        %v985 = vpop.f32.mrb[0].mxu0
        %v986 = vadd.f32 0.0, %v985
        %v987 = vpop.f32.mrb[0].mxu0
        %v988 = vpop.f32.mrb[0].mxu0
        %v989 = vadd.f32 0.0, %v988
        %v990 = vpop.f32.mrb[0].mxu0
        %991 = vmatprep.mubr.bf16.mxu0 0
        %992 = vmatmul.mubr.bf16.gmra.mrb[0].mxu0 %v822
        %v993 = vpop.f32.mrb[0].mxu0
        %v994 = vadd.f32 0.0, %v993
        %v995 = vpop.f32.mrb[0].mxu0
        %v996 = vpop.f32.mrb[0].mxu0
        %v997 = vadd.f32 0.0, %v996
        %v998 = vpop.f32.mrb[0].mxu0
        %999 = vmatprep.mubr.bf16.mxu0 0
        %1000 = vmatmul.mubr.bf16.gmra.mrb[0].mxu0 %v825
        %v1001 = vpop.f32.mrb[0].mxu0
        %v1002 = vadd.f32 0.0, %v1001
        %v1003 = vpop.f32.mrb[0].mxu0
        %v1004 = vpop.f32.mrb[0].mxu0
        %v1005 = vadd.f32 0.0, %v1004
        %v1006 = vpop.f32.mrb[0].mxu0
        %1007 = vmatprep.mubr.bf16.mxu0 0
        %1008 = vmatmul.mubr.bf16.gmra.mrb[0].mxu0 %v828
        %v1009 = vpop.f32.mrb[0].mxu0
        %v1010 = vadd.f32 0.0, %v1009
        %v1011 = vpop.f32.mrb[0].mxu0
        %v1012 = vpop.f32.mrb[0].mxu0
        %v1013 = vadd.f32 0.0, %v1012
        %v1014 = vpop.f32.mrb[0].mxu0
        %1015 = vmatprep.mubr.bf16.mxu0 0
        %1016 = vmatmul.mubr.bf16.gmra.mrb[0].mxu0 %v831
        %v1017 = vpop.f32.mrb[0].mxu0
        %v1018 = vadd.f32 0.0, %v1017
        %v1019 = vpop.f32.mrb[0].mxu0
        %v1020 = vpop.f32.mrb[0].mxu0
        %v1021 = vadd.f32 0.0, %v1020
        %v1022 = vpop.f32.mrb[0].mxu0
        %1023 = vmatprep.mubr.bf16.mxu0 0
        %1024 = vmatmul.mubr.bf16.gmra.mrb[0].mxu0 %v834
        %v1025 = vpop.f32.mrb[0].mxu0
        %v1026 = vadd.f32 0.0, %v1025
        %v1027 = vpop.f32.mrb[0].mxu0
        %v1028 = vpop.f32.mrb[0].mxu0
        %v1029 = vadd.f32 0.0, %v1028
        %v1030 = vpop.f32.mrb[0].mxu0
        %1031 = vmatprep.mubr.bf16.mxu0 0
        %1032 = vmatmul.mubr.bf16.gmra.mrb[0].mxu0 %v837
        %v1033 = vpop.f32.mrb[0].mxu0
        %v1034 = vadd.f32 0.0, %v1033
        %v1035 = vpop.f32.mrb[0].mxu0
        %v1036 = vpop.f32.mrb[0].mxu0
        %v1037 = vadd.f32 0.0, %v1036
        %v1038 = vpop.f32.mrb[0].mxu0
        %1039 = vmatprep.mubr.bf16.mxu0 0
        %1040 = vmatmul.mubr.bf16.gmra.mrb[0].mxu0 %v840
        %v1041 = vpop.f32.mrb[0].mxu0
        %v1042 = vadd.f32 0.0, %v1041
        %v1043 = vpop.f32.mrb[0].mxu0
        %v1044 = vpop.f32.mrb[0].mxu0
        %v1045 = vadd.f32 0.0, %v1044
        %v1046 = vpop.f32.mrb[0].mxu0
        %1047 = vmatprep.mubr.bf16.mxu0 0
        %1048 = vmatmul.mubr.bf16.gmra.mrb[0].mxu0 %v843
        %v1049 = vpop.f32.mrb[0].mxu0
        %v1050 = vadd.f32 0.0, %v1049
        %v1051 = vpop.f32.mrb[0].mxu0
        %v1052 = vpop.f32.mrb[0].mxu0
        %v1053 = vadd.f32 0.0, %v1052
        %v1054 = vpop.f32.mrb[0].mxu0
        %1055 = vmatprep.mubr.bf16.mxu0 0
        %1056 = vmatmul.mubr.bf16.gmra.mrb[0].mxu0 %v846
        %v1057 = vpop.f32.mrb[0].mxu0
        %v1058 = vadd.f32 0.0, %v1057
        %v1059 = vpop.f32.mrb[0].mxu0
        %v1060 = vpop.f32.mrb[0].mxu0
        %v1061 = vadd.f32 0.0, %v1060
        %v1062 = vpop.f32.mrb[0].mxu0
        %1063 = vmatprep.mubr.bf16.mxu0 0
        %1064 = vmatmul.mubr.bf16.gmra.mrb[0].mxu0 %v849
        %v1065 = vpop.f32.mrb[0].mxu0
        %v1066 = vadd.f32 0.0, %v1065
        %v1067 = vpop.f32.mrb[0].mxu0
        %v1068 = vpop.f32.mrb[0].mxu0
        %v1069 = vadd.f32 0.0, %v1068
        %v1070 = vpop.f32.mrb[0].mxu0
        %1071 = vmatprep.mubr.bf16.mxu0 0
        %1072 = vmatmul.mubr.bf16.gmra.mrb[0].mxu0 %v852
        %v1073 = vpop.f32.mrb[0].mxu0
        %v1074 = vadd.f32 0.0, %v1073
        %v1075 = vpop.f32.mrb[0].mxu0
        %v1076 = vpop.f32.mrb[0].mxu0
        %v1077 = vadd.f32 0.0, %v1076
        %v1078 = vpop.f32.mrb[0].mxu0
        %1079 = vmatprep.mubr.bf16.mxu0 0
        %1080 = vmatmul.mubr.bf16.gmra.mrb[0].mxu0 %v855
        %v1081 = vpop.f32.mrb[0].mxu0
        %v1082 = vadd.f32 0.0, %v1081
        %v1083 = vpop.f32.mrb[0].mxu0
        %v1084 = vpop.f32.mrb[0].mxu0
        %v1085 = vadd.f32 0.0, %v1084
        %v1086 = vpop.f32.mrb[0].mxu0
        %1087 = vmatprep.mubr.bf16.mxu0 0
        %1088 = vmatmul.mubr.bf16.gmra.mrb[0].mxu0 %v858
        %v1089 = vpop.f32.mrb[0].mxu0
        %v1090 = vadd.f32 0.0, %v1089
        %v1091 = vpop.f32.mrb[0].mxu0
        %v1092 = vpop.f32.mrb[0].mxu0
        %v1093 = vadd.f32 0.0, %v1092
        %v1094 = vpop.f32.mrb[0].mxu0
        %1095 = vmatprep.mubr.bf16.mxu0 0
        %1096 = vmatmul.mubr.bf16.gmra.mrb[0].mxu0 %v861
        %v1097 = vpop.f32.mrb[0].mxu0
        %v1098 = vadd.f32 0.0, %v1097
        %v1099 = vpop.f32.mrb[0].mxu0
        %v1100 = vpop.f32.mrb[0].mxu0
        %v1101 = vadd.f32 0.0, %v1100
        %v1102 = vpop.f32.mrb[0].mxu0
        %1103 = vmatprep.mubr.bf16.mxu0 0
        %1104 = vmatmul.mubr.bf16.gmra.mrb[0].mxu0 %v864
        %v1105 = vpop.f32.mrb[0].mxu0
        %v1106 = vadd.f32 0.0, %v1105
        %v1107 = vpop.f32.mrb[0].mxu0
        %v1108 = vpop.f32.mrb[0].mxu0
        %v1109 = vadd.f32 0.0, %v1108
        %v1110 = vpop.f32.mrb[0].mxu0
        %1111 = vmatprep.mubr.bf16.mxu0 0
        %1112 = vmatmul.mubr.bf16.gmra.mrb[0].mxu0 %v867
        %v1113 = vpop.f32.mrb[0].mxu0
        %v1114 = vadd.f32 0.0, %v1113
        %v1115 = vpop.f32.mrb[0].mxu0
        %v1116 = vpop.f32.mrb[0].mxu0
        %v1117 = vadd.f32 0.0, %v1116
        %v1118 = vpop.f32.mrb[0].mxu0
        %1119 = vmatprep.mubr.bf16.mxu0 0
        %1120 = vmatmul.mubr.bf16.gmra.mrb[0].mxu0 %v870
        %v1121 = vpop.f32.mrb[0].mxu0
        %v1122 = vadd.f32 0.0, %v1121
        %v1123 = vpop.f32.mrb[0].mxu0
        %v1124 = vpop.f32.mrb[0].mxu0
        %v1125 = vadd.f32 0.0, %v1124
        %v1126 = vpop.f32.mrb[0].mxu0
        %1127 = vmatprep.mubr.bf16.mxu0 0
        %1128 = vmatmul.mubr.bf16.gmra.mrb[0].mxu0 %v873
        %v1129 = vpop.f32.mrb[0].mxu0
        %v1130 = vadd.f32 0.0, %v1129
        %v1131 = vpop.f32.mrb[0].mxu0
        %v1132 = vpop.f32.mrb[0].mxu0
        %v1133 = vadd.f32 0.0, %v1132
        %v1134 = vpop.f32.mrb[0].mxu0
        %1135 = vmatprep.mubr.bf16.mxu0 0
        %1136 = vmatmul.mubr.bf16.gmra.mrb[0].mxu0 %v876
        %v1137 = vpop.f32.mrb[0].mxu0
        %v1138 = vadd.f32 0.0, %v1137
        %v1139 = vpop.f32.mrb[0].mxu0
        %v1140 = vpop.f32.mrb[0].mxu0
        %v1141 = vadd.f32 0.0, %v1140
        %v1142 = vpop.f32.mrb[0].mxu0
        %1143 = vmatprep.mubr.bf16.mxu0 0
        %1144 = vmatmul.mubr.bf16.gmra.mrb[0].mxu0 %v879
        %v1145 = vpop.f32.mrb[0].mxu0
        %v1146 = vadd.f32 0.0, %v1145
        %v1147 = vpop.f32.mrb[0].mxu0
        %v1148 = vpop.f32.mrb[0].mxu0
        %v1149 = vadd.f32 0.0, %v1148
        %v1150 = vpop.f32.mrb[0].mxu0
        %1151 = vmatprep.mubr.bf16.mxu0 0
        %1152 = vmatmul.mubr.bf16.gmra.mrb[0].mxu0 %v882
        %v1153 = vpop.f32.mrb[0].mxu0
        %v1154 = vadd.f32 0.0, %v1153
        %v1155 = vpop.f32.mrb[0].mxu0
        %v1156 = vpop.f32.mrb[0].mxu0
        %v1157 = vadd.f32 0.0, %v1156
        %v1158 = vpop.f32.mrb[0].mxu0
        %1159 = vmatprep.mubr.bf16.mxu0 0
        %1160 = vmatmul.mubr.bf16.gmra.mrb[0].mxu0 %v885
        %v1161 = vpop.f32.mrb[0].mxu0
        %v1162 = vadd.f32 0.0, %v1161
        %v1163 = vpop.f32.mrb[0].mxu0
        %v1164 = vpop.f32.mrb[0].mxu0
        %v1165 = vadd.f32 0.0, %v1164
        %v1166 = vpop.f32.mrb[0].mxu0
        %1167 = vmatprep.mubr.bf16.mxu0 0
        %1168 = vmatmul.mubr.bf16.gmra.mrb[0].mxu0 %v888
        %v1169 = vpop.f32.mrb[0].mxu0
        %v1170 = vadd.f32 0.0, %v1169
        %v1171 = vpop.f32.mrb[0].mxu0
        %v1172 = vpop.f32.mrb[0].mxu0
        %v1173 = vadd.f32 0.0, %v1172
        %v1174 = vpop.f32.mrb[0].mxu0
        %1175 = vmatprep.mubr.bf16.mxu0 0
        %1176 = vmatmul.mubr.bf16.gmra.mrb[0].mxu0 %v891
        %v1177 = vpop.f32.mrb[0].mxu0
        %v1178 = vadd.f32 0.0, %v1177
        %v1179 = vpop.f32.mrb[0].mxu0
        %v1180 = vpop.f32.mrb[0].mxu0
        %v1181 = vadd.f32 0.0, %v1180
        %v1182 = vpop.f32.mrb[0].mxu0
        %1183 = vmatprep.mubr.bf16.mxu0 0
        %1184 = vmatmul.mubr.bf16.gmra.mrb[0].mxu0 %v894
        %v1185 = vpop.f32.mrb[0].mxu0
        %v1186 = vadd.f32 0.0, %v1185
        %v1187 = vpop.f32.mrb[0].mxu0
        %v1188 = vpop.f32.mrb[0].mxu0
        %v1189 = vadd.f32 0.0, %v1188
        %v1190 = vpop.f32.mrb[0].mxu0
        %1191 = vdwg.mxu0
        %v1192 = vld [vmem:[%s2] sm:$0x1]
        %v1193 = vld [vmem:[%s3] sm:$0x1]
        %v1195 = vlaneseq
        %v1196 = vshrl.u32 %v1195, 7
        %v1197 = vsub.s32 0, %v1196
        %v1198 = vrot.slane %v1192, %v1197
        %v1200 = vmul.f32 %v938, %v1198
        %v1201 = vmul.f32 %v941, %v1198
        %v1202 = vmul.f32 %v946, %v1198
        %v1203 = vmul.f32 %v949, %v1198
        %v1204 = vmul.f32 %v954, %v1198
        %v1205 = vmul.f32 %v957, %v1198
        %v1206 = vmul.f32 %v962, %v1198
        %v1207 = vmul.f32 %v965, %v1198
        %v1208 = vmul.f32 %v970, %v1198
        %v1209 = vmul.f32 %v973, %v1198
        %v1210 = vmul.f32 %v978, %v1198
        %v1211 = vmul.f32 %v981, %v1198
        %v1212 = vmul.f32 %v986, %v1198
        %v1213 = vmul.f32 %v989, %v1198
        %v1214 = vmul.f32 %v994, %v1198
        %v1215 = vmul.f32 %v997, %v1198
        %v1216 = vmul.f32 %v1002, %v1198
        %v1217 = vmul.f32 %v1005, %v1198
        %v1218 = vmul.f32 %v1010, %v1198
        %v1219 = vmul.f32 %v1013, %v1198
        %v1220 = vmul.f32 %v1018, %v1198
        %v1221 = vmul.f32 %v1021, %v1198
        %v1222 = vmul.f32 %v1026, %v1198
        %v1223 = vmul.f32 %v1029, %v1198
        %v1224 = vmul.f32 %v1034, %v1198
        %v1225 = vmul.f32 %v1037, %v1198
        %v1226 = vmul.f32 %v1042, %v1198
        %v1227 = vmul.f32 %v1045, %v1198
        %v1228 = vmul.f32 %v1050, %v1198
        %v1229 = vmul.f32 %v1053, %v1198
        %v1230 = vmul.f32 %v1058, %v1198
        %v1231 = vmul.f32 %v1061, %v1198
        %v1232 = vmul.f32 %v1066, %v1198
        %v1233 = vmul.f32 %v1069, %v1198
        %v1234 = vmul.f32 %v1074, %v1198
        %v1235 = vmul.f32 %v1077, %v1198
        %v1236 = vmul.f32 %v1082, %v1198
        %v1237 = vmul.f32 %v1085, %v1198
        %v1238 = vmul.f32 %v1090, %v1198
        %v1239 = vmul.f32 %v1093, %v1198
        %v1240 = vmul.f32 %v1098, %v1198
        %v1241 = vmul.f32 %v1101, %v1198
        %v1242 = vmul.f32 %v1106, %v1198
        %v1243 = vmul.f32 %v1109, %v1198
        %v1244 = vmul.f32 %v1114, %v1198
        %v1245 = vmul.f32 %v1117, %v1198
        %v1246 = vmul.f32 %v1122, %v1198
        %v1247 = vmul.f32 %v1125, %v1198
        %v1248 = vmul.f32 %v1130, %v1198
        %v1249 = vmul.f32 %v1133, %v1198
        %v1250 = vmul.f32 %v1138, %v1198
        %v1251 = vmul.f32 %v1141, %v1198
        %v1252 = vmul.f32 %v1146, %v1198
        %v1253 = vmul.f32 %v1149, %v1198
        %v1254 = vmul.f32 %v1154, %v1198
        %v1255 = vmul.f32 %v1157, %v1198
        %v1256 = vmul.f32 %v1162, %v1198
        %v1257 = vmul.f32 %v1165, %v1198
        %v1258 = vmul.f32 %v1170, %v1198
        %v1259 = vmul.f32 %v1173, %v1198
        %v1260 = vmul.f32 %v1178, %v1198
        %v1261 = vmul.f32 %v1181, %v1198
        %v1262 = vmul.f32 %v1186, %v1198
        %v1263 = vmul.f32 %v1189, %v1198
        %v1265 = vlaneseq
        %v1266 = vshrl.u32 %v1265, 7
        %v1267 = vsub.s32 0, %v1266
        %v1268 = vrot.slane %v1193, %v1267
        %v1270 = vadd.f32 %v1200, %v1268
        %v1271 = vadd.f32 %v1201, %v1268
        %v1272 = vadd.f32 %v1202, %v1268
        %v1273 = vadd.f32 %v1203, %v1268
        %v1274 = vadd.f32 %v1204, %v1268
        %v1275 = vadd.f32 %v1205, %v1268
        %v1276 = vadd.f32 %v1206, %v1268
        %v1277 = vadd.f32 %v1207, %v1268
        %v1278 = vadd.f32 %v1208, %v1268
        %v1279 = vadd.f32 %v1209, %v1268
        %v1280 = vadd.f32 %v1210, %v1268
        %v1281 = vadd.f32 %v1211, %v1268
        %v1282 = vadd.f32 %v1212, %v1268
        %v1283 = vadd.f32 %v1213, %v1268
        %v1284 = vadd.f32 %v1214, %v1268
        %v1285 = vadd.f32 %v1215, %v1268
        %v1286 = vadd.f32 %v1216, %v1268
        %v1287 = vadd.f32 %v1217, %v1268
        %v1288 = vadd.f32 %v1218, %v1268
        %v1289 = vadd.f32 %v1219, %v1268
        %v1290 = vadd.f32 %v1220, %v1268
        %v1291 = vadd.f32 %v1221, %v1268
        %v1292 = vadd.f32 %v1222, %v1268
        %v1293 = vadd.f32 %v1223, %v1268
        %v1294 = vadd.f32 %v1224, %v1268
        %v1295 = vadd.f32 %v1225, %v1268
        %v1296 = vadd.f32 %v1226, %v1268
        %v1297 = vadd.f32 %v1227, %v1268
        %v1298 = vadd.f32 %v1228, %v1268
        %v1299 = vadd.f32 %v1229, %v1268
        %v1300 = vadd.f32 %v1230, %v1268
        %v1301 = vadd.f32 %v1231, %v1268
        %v1302 = vadd.f32 %v1232, %v1268
        %v1303 = vadd.f32 %v1233, %v1268
        %v1304 = vadd.f32 %v1234, %v1268
        %v1305 = vadd.f32 %v1235, %v1268
        %v1306 = vadd.f32 %v1236, %v1268
        %v1307 = vadd.f32 %v1237, %v1268
        %v1308 = vadd.f32 %v1238, %v1268
        %v1309 = vadd.f32 %v1239, %v1268
        %v1310 = vadd.f32 %v1240, %v1268
        %v1311 = vadd.f32 %v1241, %v1268
        %v1312 = vadd.f32 %v1242, %v1268
        %v1313 = vadd.f32 %v1243, %v1268
        %v1314 = vadd.f32 %v1244, %v1268
        %v1315 = vadd.f32 %v1245, %v1268
        %v1316 = vadd.f32 %v1246, %v1268
        %v1317 = vadd.f32 %v1247, %v1268
        %v1318 = vadd.f32 %v1248, %v1268
        %v1319 = vadd.f32 %v1249, %v1268
        %v1320 = vadd.f32 %v1250, %v1268
        %v1321 = vadd.f32 %v1251, %v1268
        %v1322 = vadd.f32 %v1252, %v1268
        %v1323 = vadd.f32 %v1253, %v1268
        %v1324 = vadd.f32 %v1254, %v1268
        %v1325 = vadd.f32 %v1255, %v1268
        %v1326 = vadd.f32 %v1256, %v1268
        %v1327 = vadd.f32 %v1257, %v1268
        %v1328 = vadd.f32 %v1258, %v1268
        %v1329 = vadd.f32 %v1259, %v1268
        %v1330 = vadd.f32 %v1260, %v1268
        %v1331 = vadd.f32 %v1261, %v1268
        %v1332 = vadd.f32 %v1262, %v1268
        %v1333 = vadd.f32 %v1263, %v1268
        %v1334 = vmax.f32 %v1270, 0.0
        %v1335 = vmax.f32 %v1271, 0.0
        %v1336 = vmax.f32 %v1272, 0.0
        %v1337 = vmax.f32 %v1273, 0.0
        %v1338 = vmax.f32 %v1274, 0.0
        %v1339 = vmax.f32 %v1275, 0.0
        %v1340 = vmax.f32 %v1276, 0.0
        %v1341 = vmax.f32 %v1277, 0.0
        %v1342 = vmax.f32 %v1278, 0.0
        %v1343 = vmax.f32 %v1279, 0.0
        %v1344 = vmax.f32 %v1280, 0.0
        %v1345 = vmax.f32 %v1281, 0.0
        %v1346 = vmax.f32 %v1282, 0.0
        %v1347 = vmax.f32 %v1283, 0.0
        %v1348 = vmax.f32 %v1284, 0.0
        %v1349 = vmax.f32 %v1285, 0.0
        %v1350 = vmax.f32 %v1286, 0.0
        %v1351 = vmax.f32 %v1287, 0.0
        %v1352 = vmax.f32 %v1288, 0.0
        %v1353 = vmax.f32 %v1289, 0.0
        %v1354 = vmax.f32 %v1290, 0.0
        %v1355 = vmax.f32 %v1291, 0.0
        %v1356 = vmax.f32 %v1292, 0.0
        %v1357 = vmax.f32 %v1293, 0.0
        %v1358 = vmax.f32 %v1294, 0.0
        %v1359 = vmax.f32 %v1295, 0.0
        %v1360 = vmax.f32 %v1296, 0.0
        %v1361 = vmax.f32 %v1297, 0.0
        %v1362 = vmax.f32 %v1298, 0.0
        %v1363 = vmax.f32 %v1299, 0.0
        %v1364 = vmax.f32 %v1300, 0.0
        %v1365 = vmax.f32 %v1301, 0.0
        %v1366 = vmax.f32 %v1302, 0.0
        %v1367 = vmax.f32 %v1303, 0.0
        %v1368 = vmax.f32 %v1304, 0.0
        %v1369 = vmax.f32 %v1305, 0.0
        %v1370 = vmax.f32 %v1306, 0.0
        %v1371 = vmax.f32 %v1307, 0.0
        %v1372 = vmax.f32 %v1308, 0.0
        %v1373 = vmax.f32 %v1309, 0.0
        %v1374 = vmax.f32 %v1310, 0.0
        %v1375 = vmax.f32 %v1311, 0.0
        %v1376 = vmax.f32 %v1312, 0.0
        %v1377 = vmax.f32 %v1313, 0.0
        %v1378 = vmax.f32 %v1314, 0.0
        %v1379 = vmax.f32 %v1315, 0.0
        %v1380 = vmax.f32 %v1316, 0.0
        %v1381 = vmax.f32 %v1317, 0.0
        %v1382 = vmax.f32 %v1318, 0.0
        %v1383 = vmax.f32 %v1319, 0.0
        %v1384 = vmax.f32 %v1320, 0.0
        %v1385 = vmax.f32 %v1321, 0.0
        %v1386 = vmax.f32 %v1322, 0.0
        %v1387 = vmax.f32 %v1323, 0.0
        %v1388 = vmax.f32 %v1324, 0.0
        %v1389 = vmax.f32 %v1325, 0.0
        %v1390 = vmax.f32 %v1326, 0.0
        %v1391 = vmax.f32 %v1327, 0.0
        %v1392 = vmax.f32 %v1328, 0.0
        %v1393 = vmax.f32 %v1329, 0.0
        %v1394 = vmax.f32 %v1330, 0.0
        %v1395 = vmax.f32 %v1331, 0.0
        %v1396 = vmax.f32 %v1332, 0.0
        %v1397 = vmax.f32 %v1333, 0.0
        %v1398 = vpack.c.bf16 %v1335, %v1334
        %v1399 = vpack.c.bf16 %v1337, %v1336
        %v1400 = vpack.c.bf16 %v1339, %v1338
        %v1401 = vpack.c.bf16 %v1341, %v1340
        %v1402 = vpack.c.bf16 %v1343, %v1342
        %v1403 = vpack.c.bf16 %v1345, %v1344
        %v1404 = vpack.c.bf16 %v1347, %v1346
        %v1405 = vpack.c.bf16 %v1349, %v1348
        %v1406 = vpack.c.bf16 %v1351, %v1350
        %v1407 = vpack.c.bf16 %v1353, %v1352
        %v1408 = vpack.c.bf16 %v1355, %v1354
        %v1409 = vpack.c.bf16 %v1357, %v1356
        %v1410 = vpack.c.bf16 %v1359, %v1358
        %v1411 = vpack.c.bf16 %v1361, %v1360
        %v1412 = vpack.c.bf16 %v1363, %v1362
        %v1413 = vpack.c.bf16 %v1365, %v1364
        %v1414 = vpack.c.bf16 %v1367, %v1366
        %v1415 = vpack.c.bf16 %v1369, %v1368
        %v1416 = vpack.c.bf16 %v1371, %v1370
        %v1417 = vpack.c.bf16 %v1373, %v1372
        %v1418 = vpack.c.bf16 %v1375, %v1374
        %v1419 = vpack.c.bf16 %v1377, %v1376
        %v1420 = vpack.c.bf16 %v1379, %v1378
        %v1421 = vpack.c.bf16 %v1381, %v1380
        %v1422 = vpack.c.bf16 %v1383, %v1382
        %v1423 = vpack.c.bf16 %v1385, %v1384
        %v1424 = vpack.c.bf16 %v1387, %v1386
        %v1425 = vpack.c.bf16 %v1389, %v1388
        %v1426 = vpack.c.bf16 %v1391, %v1390
        %v1427 = vpack.c.bf16 %v1393, %v1392
        %v1428 = vpack.c.bf16 %v1395, %v1394
        %v1429 = vpack.c.bf16 %v1397, %v1396
        %v1430 = vld [vmem:[%s4] sm:$0xf]
        %v1431 = vld [vmem:[%s4 + $0x4] sm:$0xf]
        %v1434 = vunpack.c.l.b16 %v1430
        %v1435 = vunpack.c.l.b16 %v1431
        %v1436 = vpack.c.b16 %v1435, %v1434
        %vm1438 = vcmask 130048
        %v1440 = vsel %vm1438, %v1398, 0
        %v1443 = vsel %vm1438, %v1399, 0
        %v1446 = vsel %vm1438, %v1400, 0
        %v1449 = vsel %vm1438, %v1401, 0
        %v1452 = vsel %vm1438, %v1402, 0
        %v1455 = vsel %vm1438, %v1403, 0
        %v1458 = vsel %vm1438, %v1404, 0
        %v1461 = vsel %vm1438, %v1405, 0
        %v1464 = vsel %vm1438, %v1406, 0
        %v1467 = vsel %vm1438, %v1407, 0
        %v1470 = vsel %vm1438, %v1408, 0
        %v1473 = vsel %vm1438, %v1409, 0
        %v1476 = vsel %vm1438, %v1410, 0
        %v1479 = vsel %vm1438, %v1411, 0
        %v1482 = vsel %vm1438, %v1412, 0
        %v1485 = vsel %vm1438, %v1413, 0
        %v1488 = vsel %vm1438, %v1414, 0
        %v1491 = vsel %vm1438, %v1415, 0
        %v1494 = vsel %vm1438, %v1416, 0
        %v1497 = vsel %vm1438, %v1417, 0
        %v1500 = vsel %vm1438, %v1418, 0
        %v1503 = vsel %vm1438, %v1419, 0
        %v1506 = vsel %vm1438, %v1420, 0
        %v1509 = vsel %vm1438, %v1421, 0
        %v1512 = vsel %vm1438, %v1422, 0
        %v1515 = vsel %vm1438, %v1423, 0
        %v1518 = vsel %vm1438, %v1424, 0
        %v1521 = vsel %vm1438, %v1425, 0
        %v1524 = vsel %vm1438, %v1426, 0
        %v1527 = vsel %vm1438, %v1427, 0
        %v1530 = vsel %vm1438, %v1428, 0
        %v1533 = vsel %vm1438, %v1429, 0
        %1535 = vmatprep.subr.bf16.mxu0 0
        %1536 = vmatpush1.bf16.msra.mxu0 %v1436
        %1537 = vmatprep.subr.bf16.mxu0 0
        %1538 = vmatpush1.bf16.msra.mxu0 0
        %1539 = vmatprep.subr.bf16.mxu0 0
        %1540 = vmatpush1.bf16.msra.mxu0 0
        %1541 = vmatprep.subr.bf16.mxu0 0
        %1542 = vmatpush1.bf16.msra.mxu0 0
        %1543 = vmatprep.subr.bf16.mxu0 0
        %1544 = vmatpush1.bf16.msra.mxu0 0
        %1545 = vmatprep.subr.bf16.mxu0 0
        %1546 = vmatpush1.bf16.msra.mxu0 0
        %1547 = vmatprep.subr.bf16.mxu0 0
        %1548 = vmatpush1.bf16.msra.mxu0 0
        %1549 = vmatprep.subr.bf16.mxu0 0
        %1550 = vmatpush1.bf16.msra.mxu0 0
        %1551 = vmatprep.subr.bf16.mxu0 0
        %1552 = vmatpush1.bf16.msra.mxu0 0
        %1553 = vmatprep.subr.bf16.mxu0 0
        %1554 = vmatpush1.bf16.msra.mxu0 0
        %1555 = vmatprep.subr.bf16.mxu0 0
        %1556 = vmatpush1.bf16.msra.mxu0 0
        %1557 = vmatprep.subr.bf16.mxu0 0
        %1558 = vmatpush1.bf16.msra.mxu0 0
        %1559 = vmatprep.subr.bf16.mxu0 0
        %1560 = vmatpush1.bf16.msra.mxu0 0
        %1561 = vmatprep.subr.bf16.mxu0 0
        %1562 = vmatpush1.bf16.msra.mxu0 0
        %1563 = vmatprep.subr.bf16.mxu0 0
        %1564 = vmatpush1.bf16.msra.mxu0 0
        %1565 = vmatprep.subr.bf16.mxu0 0
        %1566 = vmatpush1.bf16.msra.mxu0 0
        %1567 = vmatprep.mubr.bf16.mxu0 0
        %1568 = vmatmul.mubr.bf16.gmra.mrb[0].mxu0 %v1440
        %v1569 = vpop.f32.mrb[0].mxu0
        %v1570 = vadd.f32 0.0, %v1569
        %v1571 = vpop.f32.mrb[0].mxu0
        %v1572 = vpop.f32.mrb[0].mxu0
        %v1573 = vadd.f32 0.0, %v1572
        %v1574 = vpop.f32.mrb[0].mxu0
        %1575 = vmatprep.mubr.bf16.mxu0 0
        %1576 = vmatmul.mubr.bf16.gmra.mrb[0].mxu0 %v1443
        %v1577 = vpop.f32.mrb[0].mxu0
        %v1578 = vadd.f32 0.0, %v1577
        %v1579 = vpop.f32.mrb[0].mxu0
        %v1580 = vpop.f32.mrb[0].mxu0
        %v1581 = vadd.f32 0.0, %v1580
        %v1582 = vpop.f32.mrb[0].mxu0
        %1583 = vmatprep.mubr.bf16.mxu0 0
        %1584 = vmatmul.mubr.bf16.gmra.mrb[0].mxu0 %v1446
        %v1585 = vpop.f32.mrb[0].mxu0
        %v1586 = vadd.f32 0.0, %v1585
        %v1587 = vpop.f32.mrb[0].mxu0
        %v1588 = vpop.f32.mrb[0].mxu0
        %v1589 = vadd.f32 0.0, %v1588
        %v1590 = vpop.f32.mrb[0].mxu0
        %1591 = vmatprep.mubr.bf16.mxu0 0
        %1592 = vmatmul.mubr.bf16.gmra.mrb[0].mxu0 %v1449
        %v1593 = vpop.f32.mrb[0].mxu0
        %v1594 = vadd.f32 0.0, %v1593
        %v1595 = vpop.f32.mrb[0].mxu0
        %v1596 = vpop.f32.mrb[0].mxu0
        %v1597 = vadd.f32 0.0, %v1596
        %v1598 = vpop.f32.mrb[0].mxu0
        %1599 = vmatprep.mubr.bf16.mxu0 0
        %1600 = vmatmul.mubr.bf16.gmra.mrb[0].mxu0 %v1452
        %v1601 = vpop.f32.mrb[0].mxu0
        %v1602 = vadd.f32 0.0, %v1601
        %v1603 = vpop.f32.mrb[0].mxu0
        %v1604 = vpop.f32.mrb[0].mxu0
        %v1605 = vadd.f32 0.0, %v1604
        %v1606 = vpop.f32.mrb[0].mxu0
        %1607 = vmatprep.mubr.bf16.mxu0 0
        %1608 = vmatmul.mubr.bf16.gmra.mrb[0].mxu0 %v1455
        %v1609 = vpop.f32.mrb[0].mxu0
        %v1610 = vadd.f32 0.0, %v1609
        %v1611 = vpop.f32.mrb[0].mxu0
        %v1612 = vpop.f32.mrb[0].mxu0
        %v1613 = vadd.f32 0.0, %v1612
        %v1614 = vpop.f32.mrb[0].mxu0
        %1615 = vmatprep.mubr.bf16.mxu0 0
        %1616 = vmatmul.mubr.bf16.gmra.mrb[0].mxu0 %v1458
        %v1617 = vpop.f32.mrb[0].mxu0
        %v1618 = vadd.f32 0.0, %v1617
        %v1619 = vpop.f32.mrb[0].mxu0
        %v1620 = vpop.f32.mrb[0].mxu0
        %v1621 = vadd.f32 0.0, %v1620
        %v1622 = vpop.f32.mrb[0].mxu0
        %1623 = vmatprep.mubr.bf16.mxu0 0
        %1624 = vmatmul.mubr.bf16.gmra.mrb[0].mxu0 %v1461
        %v1625 = vpop.f32.mrb[0].mxu0
        %v1626 = vadd.f32 0.0, %v1625
        %v1627 = vpop.f32.mrb[0].mxu0
        %v1628 = vpop.f32.mrb[0].mxu0
        %v1629 = vadd.f32 0.0, %v1628
        %v1630 = vpop.f32.mrb[0].mxu0
        %1631 = vmatprep.mubr.bf16.mxu0 0
        %1632 = vmatmul.mubr.bf16.gmra.mrb[0].mxu0 %v1464
        %v1633 = vpop.f32.mrb[0].mxu0
        %v1634 = vadd.f32 0.0, %v1633
        %v1635 = vpop.f32.mrb[0].mxu0
        %v1636 = vpop.f32.mrb[0].mxu0
        %v1637 = vadd.f32 0.0, %v1636
        %v1638 = vpop.f32.mrb[0].mxu0
        %1639 = vmatprep.mubr.bf16.mxu0 0
        %1640 = vmatmul.mubr.bf16.gmra.mrb[0].mxu0 %v1467
        %v1641 = vpop.f32.mrb[0].mxu0
        %v1642 = vadd.f32 0.0, %v1641
        %v1643 = vpop.f32.mrb[0].mxu0
        %v1644 = vpop.f32.mrb[0].mxu0
        %v1645 = vadd.f32 0.0, %v1644
        %v1646 = vpop.f32.mrb[0].mxu0
        %1647 = vmatprep.mubr.bf16.mxu0 0
        %1648 = vmatmul.mubr.bf16.gmra.mrb[0].mxu0 %v1470
        %v1649 = vpop.f32.mrb[0].mxu0
        %v1650 = vadd.f32 0.0, %v1649
        %v1651 = vpop.f32.mrb[0].mxu0
        %v1652 = vpop.f32.mrb[0].mxu0
        %v1653 = vadd.f32 0.0, %v1652
        %v1654 = vpop.f32.mrb[0].mxu0
        %1655 = vmatprep.mubr.bf16.mxu0 0
        %1656 = vmatmul.mubr.bf16.gmra.mrb[0].mxu0 %v1473
        %v1657 = vpop.f32.mrb[0].mxu0
        %v1658 = vadd.f32 0.0, %v1657
        %v1659 = vpop.f32.mrb[0].mxu0
        %v1660 = vpop.f32.mrb[0].mxu0
        %v1661 = vadd.f32 0.0, %v1660
        %v1662 = vpop.f32.mrb[0].mxu0
        %1663 = vmatprep.mubr.bf16.mxu0 0
        %1664 = vmatmul.mubr.bf16.gmra.mrb[0].mxu0 %v1476
        %v1665 = vpop.f32.mrb[0].mxu0
        %v1666 = vadd.f32 0.0, %v1665
        %v1667 = vpop.f32.mrb[0].mxu0
        %v1668 = vpop.f32.mrb[0].mxu0
        %v1669 = vadd.f32 0.0, %v1668
        %v1670 = vpop.f32.mrb[0].mxu0
        %1671 = vmatprep.mubr.bf16.mxu0 0
        %1672 = vmatmul.mubr.bf16.gmra.mrb[0].mxu0 %v1479
        %v1673 = vpop.f32.mrb[0].mxu0
        %v1674 = vadd.f32 0.0, %v1673
        %v1675 = vpop.f32.mrb[0].mxu0
        %v1676 = vpop.f32.mrb[0].mxu0
        %v1677 = vadd.f32 0.0, %v1676
        %v1678 = vpop.f32.mrb[0].mxu0
        %1679 = vmatprep.mubr.bf16.mxu0 0
        %1680 = vmatmul.mubr.bf16.gmra.mrb[0].mxu0 %v1482
        %v1681 = vpop.f32.mrb[0].mxu0
        %v1682 = vadd.f32 0.0, %v1681
        %v1683 = vpop.f32.mrb[0].mxu0
        %v1684 = vpop.f32.mrb[0].mxu0
        %v1685 = vadd.f32 0.0, %v1684
        %v1686 = vpop.f32.mrb[0].mxu0
        %1687 = vmatprep.mubr.bf16.mxu0 0
        %1688 = vmatmul.mubr.bf16.gmra.mrb[0].mxu0 %v1485
        %v1689 = vpop.f32.mrb[0].mxu0
        %v1690 = vadd.f32 0.0, %v1689
        %v1691 = vpop.f32.mrb[0].mxu0
        %v1692 = vpop.f32.mrb[0].mxu0
        %v1693 = vadd.f32 0.0, %v1692
        %v1694 = vpop.f32.mrb[0].mxu0
        %1695 = vmatprep.mubr.bf16.mxu0 0
        %1696 = vmatmul.mubr.bf16.gmra.mrb[0].mxu0 %v1488
        %v1697 = vpop.f32.mrb[0].mxu0
        %v1698 = vadd.f32 0.0, %v1697
        %v1699 = vpop.f32.mrb[0].mxu0
        %v1700 = vpop.f32.mrb[0].mxu0
        %v1701 = vadd.f32 0.0, %v1700
        %v1702 = vpop.f32.mrb[0].mxu0
        %1703 = vmatprep.mubr.bf16.mxu0 0
        %1704 = vmatmul.mubr.bf16.gmra.mrb[0].mxu0 %v1491
        %v1705 = vpop.f32.mrb[0].mxu0
        %v1706 = vadd.f32 0.0, %v1705
        %v1707 = vpop.f32.mrb[0].mxu0
        %v1708 = vpop.f32.mrb[0].mxu0
        %v1709 = vadd.f32 0.0, %v1708
        %v1710 = vpop.f32.mrb[0].mxu0
        %1711 = vmatprep.mubr.bf16.mxu0 0
        %1712 = vmatmul.mubr.bf16.gmra.mrb[0].mxu0 %v1494
        %v1713 = vpop.f32.mrb[0].mxu0
        %v1714 = vadd.f32 0.0, %v1713
        %v1715 = vpop.f32.mrb[0].mxu0
        %v1716 = vpop.f32.mrb[0].mxu0
        %v1717 = vadd.f32 0.0, %v1716
        %v1718 = vpop.f32.mrb[0].mxu0
        %1719 = vmatprep.mubr.bf16.mxu0 0
        %1720 = vmatmul.mubr.bf16.gmra.mrb[0].mxu0 %v1497
        %v1721 = vpop.f32.mrb[0].mxu0
        %v1722 = vadd.f32 0.0, %v1721
        %v1723 = vpop.f32.mrb[0].mxu0
        %v1724 = vpop.f32.mrb[0].mxu0
        %v1725 = vadd.f32 0.0, %v1724
        %v1726 = vpop.f32.mrb[0].mxu0
        %1727 = vmatprep.mubr.bf16.mxu0 0
        %1728 = vmatmul.mubr.bf16.gmra.mrb[0].mxu0 %v1500
        %v1729 = vpop.f32.mrb[0].mxu0
        %v1730 = vadd.f32 0.0, %v1729
        %v1731 = vpop.f32.mrb[0].mxu0
        %v1732 = vpop.f32.mrb[0].mxu0
        %v1733 = vadd.f32 0.0, %v1732
        %v1734 = vpop.f32.mrb[0].mxu0
        %1735 = vmatprep.mubr.bf16.mxu0 0
        %1736 = vmatmul.mubr.bf16.gmra.mrb[0].mxu0 %v1503
        %v1737 = vpop.f32.mrb[0].mxu0
        %v1738 = vadd.f32 0.0, %v1737
        %v1739 = vpop.f32.mrb[0].mxu0
        %v1740 = vpop.f32.mrb[0].mxu0
        %v1741 = vadd.f32 0.0, %v1740
        %v1742 = vpop.f32.mrb[0].mxu0
        %1743 = vmatprep.mubr.bf16.mxu0 0
        %1744 = vmatmul.mubr.bf16.gmra.mrb[0].mxu0 %v1506
        %v1745 = vpop.f32.mrb[0].mxu0
        %v1746 = vadd.f32 0.0, %v1745
        %v1747 = vpop.f32.mrb[0].mxu0
        %v1748 = vpop.f32.mrb[0].mxu0
        %v1749 = vadd.f32 0.0, %v1748
        %v1750 = vpop.f32.mrb[0].mxu0
        %1751 = vmatprep.mubr.bf16.mxu0 0
        %1752 = vmatmul.mubr.bf16.gmra.mrb[0].mxu0 %v1509
        %v1753 = vpop.f32.mrb[0].mxu0
        %v1754 = vadd.f32 0.0, %v1753
        %v1755 = vpop.f32.mrb[0].mxu0
        %v1756 = vpop.f32.mrb[0].mxu0
        %v1757 = vadd.f32 0.0, %v1756
        %v1758 = vpop.f32.mrb[0].mxu0
        %1759 = vmatprep.mubr.bf16.mxu0 0
        %1760 = vmatmul.mubr.bf16.gmra.mrb[0].mxu0 %v1512
        %v1761 = vpop.f32.mrb[0].mxu0
        %v1762 = vadd.f32 0.0, %v1761
        %v1763 = vpop.f32.mrb[0].mxu0
        %v1764 = vpop.f32.mrb[0].mxu0
        %v1765 = vadd.f32 0.0, %v1764
        %v1766 = vpop.f32.mrb[0].mxu0
        %1767 = vmatprep.mubr.bf16.mxu0 0
        %1768 = vmatmul.mubr.bf16.gmra.mrb[0].mxu0 %v1515
        %v1769 = vpop.f32.mrb[0].mxu0
        %v1770 = vadd.f32 0.0, %v1769
        %v1771 = vpop.f32.mrb[0].mxu0
        %v1772 = vpop.f32.mrb[0].mxu0
        %v1773 = vadd.f32 0.0, %v1772
        %v1774 = vpop.f32.mrb[0].mxu0
        %1775 = vmatprep.mubr.bf16.mxu0 0
        %1776 = vmatmul.mubr.bf16.gmra.mrb[0].mxu0 %v1518
        %v1777 = vpop.f32.mrb[0].mxu0
        %v1778 = vadd.f32 0.0, %v1777
        %v1779 = vpop.f32.mrb[0].mxu0
        %v1780 = vpop.f32.mrb[0].mxu0
        %v1781 = vadd.f32 0.0, %v1780
        %v1782 = vpop.f32.mrb[0].mxu0
        %1783 = vmatprep.mubr.bf16.mxu0 0
        %1784 = vmatmul.mubr.bf16.gmra.mrb[0].mxu0 %v1521
        %v1785 = vpop.f32.mrb[0].mxu0
        %v1786 = vadd.f32 0.0, %v1785
        %v1787 = vpop.f32.mrb[0].mxu0
        %v1788 = vpop.f32.mrb[0].mxu0
        %v1789 = vadd.f32 0.0, %v1788
        %v1790 = vpop.f32.mrb[0].mxu0
        %1791 = vmatprep.mubr.bf16.mxu0 0
        %1792 = vmatmul.mubr.bf16.gmra.mrb[0].mxu0 %v1524
        %v1793 = vpop.f32.mrb[0].mxu0
        %v1794 = vadd.f32 0.0, %v1793
        %v1795 = vpop.f32.mrb[0].mxu0
        %v1796 = vpop.f32.mrb[0].mxu0
        %v1797 = vadd.f32 0.0, %v1796
        %v1798 = vpop.f32.mrb[0].mxu0
        %1799 = vmatprep.mubr.bf16.mxu0 0
        %1800 = vmatmul.mubr.bf16.gmra.mrb[0].mxu0 %v1527
        %v1801 = vpop.f32.mrb[0].mxu0
        %v1802 = vadd.f32 0.0, %v1801
        %v1803 = vpop.f32.mrb[0].mxu0
        %v1804 = vpop.f32.mrb[0].mxu0
        %v1805 = vadd.f32 0.0, %v1804
        %v1806 = vpop.f32.mrb[0].mxu0
        %1807 = vmatprep.mubr.bf16.mxu0 0
        %1808 = vmatmul.mubr.bf16.gmra.mrb[0].mxu0 %v1530
        %v1809 = vpop.f32.mrb[0].mxu0
        %v1810 = vadd.f32 0.0, %v1809
        %v1811 = vpop.f32.mrb[0].mxu0
        %v1812 = vpop.f32.mrb[0].mxu0
        %v1813 = vadd.f32 0.0, %v1812
        %v1814 = vpop.f32.mrb[0].mxu0
        %1815 = vmatprep.mubr.bf16.mxu0 0
        %1816 = vmatmul.mubr.bf16.gmra.mrb[0].mxu0 %v1533
        %v1817 = vpop.f32.mrb[0].mxu0
        %v1818 = vadd.f32 0.0, %v1817
        %v1819 = vpop.f32.mrb[0].mxu0
        %v1820 = vpop.f32.mrb[0].mxu0
        %v1821 = vadd.f32 0.0, %v1820
        %v1822 = vpop.f32.mrb[0].mxu0
        %1823 = vdwg.mxu0
        %v1824 = vld [vmem:[%s5] sm:$0x1]
        %v1825 = vld [vmem:[%s6] sm:$0x1]
        %v1826 = vmax.f32 %v1570, %v1586
        %v1827 = vmax.f32 %v1573, %v1589
        %v1828 = vmax.f32 %v1578, %v1594
        %v1829 = vmax.f32 %v1581, %v1597
        %v1830 = vmax.f32 %v1826, %v1602
        %v1831 = vmax.f32 %v1827, %v1605
        %v1832 = vmax.f32 %v1828, %v1610
        %v1833 = vmax.f32 %v1829, %v1613
        %v1834 = vmax.f32 %v1830, %v1618
        %v1835 = vmax.f32 %v1831, %v1621
        %v1836 = vmax.f32 %v1832, %v1626
        %v1837 = vmax.f32 %v1833, %v1629
        %v1838 = vmax.f32 %v1834, %v1634
        %v1839 = vmax.f32 %v1835, %v1637
        %v1840 = vmax.f32 %v1836, %v1642
        %v1841 = vmax.f32 %v1837, %v1645
        %v1842 = vmax.f32 %v1838, %v1650
        %v1843 = vmax.f32 %v1839, %v1653
        %v1844 = vmax.f32 %v1840, %v1658
        %v1845 = vmax.f32 %v1841, %v1661
        %v1846 = vmax.f32 %v1842, %v1666
        %v1847 = vmax.f32 %v1843, %v1669
        %v1848 = vmax.f32 %v1844, %v1674
        %v1849 = vmax.f32 %v1845, %v1677
        %v1850 = vmax.f32 %v1846, %v1682
        %v1851 = vmax.f32 %v1847, %v1685
        %v1852 = vmax.f32 %v1848, %v1690
        %v1853 = vmax.f32 %v1849, %v1693
        %v1854 = vmax.f32 %v1850, %v1698
        %v1855 = vmax.f32 %v1851, %v1701
        %v1856 = vmax.f32 %v1852, %v1706
        %v1857 = vmax.f32 %v1853, %v1709
        %v1858 = vmax.f32 %v1854, %v1714
        %v1859 = vmax.f32 %v1855, %v1717
        %v1860 = vmax.f32 %v1856, %v1722
        %v1861 = vmax.f32 %v1857, %v1725
        %v1862 = vmax.f32 %v1858, %v1730
        %v1863 = vmax.f32 %v1859, %v1733
        %v1864 = vmax.f32 %v1860, %v1738
        %v1865 = vmax.f32 %v1861, %v1741
        %v1866 = vmax.f32 %v1862, %v1746
        %v1867 = vmax.f32 %v1863, %v1749
        %v1868 = vmax.f32 %v1864, %v1754
        %v1869 = vmax.f32 %v1865, %v1757
        %v1870 = vmax.f32 %v1866, %v1762
        %v1871 = vmax.f32 %v1867, %v1765
        %v1872 = vmax.f32 %v1868, %v1770
        %v1873 = vmax.f32 %v1869, %v1773
        %v1874 = vmax.f32 %v1870, %v1778
        %v1875 = vmax.f32 %v1871, %v1781
        %v1876 = vmax.f32 %v1872, %v1786
        %v1877 = vmax.f32 %v1873, %v1789
        %v1878 = vmax.f32 %v1874, %v1794
        %v1879 = vmax.f32 %v1875, %v1797
        %v1880 = vmax.f32 %v1876, %v1802
        %v1881 = vmax.f32 %v1877, %v1805
        %v1882 = vmax.f32 %v1878, %v1810
        %v1883 = vmax.f32 %v1879, %v1813
        %v1884 = vmax.f32 %v1880, %v1818
        %v1885 = vmax.f32 %v1881, %v1821
        %v1887 = vlaneseq
        %v1888 = vshrl.u32 %v1887, 7
        %v1889 = vsub.s32 0, %v1888
        %v1890 = vrot.slane %v1824, %v1889
        %v1892 = vmul.f32 %v1882, %v1890
        %v1893 = vmul.f32 %v1883, %v1890
        %v1894 = vmul.f32 %v1884, %v1890
        %v1895 = vmul.f32 %v1885, %v1890
        %v1897 = vlaneseq
        %v1898 = vshrl.u32 %v1897, 7
        %v1899 = vsub.s32 0, %v1898
        %v1900 = vrot.slane %v1825, %v1899
        %v1902 = vadd.f32 %v1892, %v1900
        %v1903 = vadd.f32 %v1893, %v1900
        %v1904 = vadd.f32 %v1894, %v1900
        %v1905 = vadd.f32 %v1895, %v1900
        %v1906 = vmax.f32 %v1902, 0.0
        %v1907 = vmax.f32 %v1903, 0.0
        %v1908 = vmax.f32 %v1904, 0.0
        %v1909 = vmax.f32 %v1905, 0.0
        %1910 = vst [vmem:[%s570] sm:$0xff] %v1906
        %1911 = vst [vmem:[%s570 + $0x8] sm:$0xff] %v1907
        %1912 = vst [vmem:[%s570 + $0x10] sm:$0xff] %v1908
        %1913 = vst [vmem:[%s570 + $0x18] sm:$0xff] %v1909
        %s1914 = sand.u32 %s181, 1
        %s1915 = scalar_lea.sflag [#allocation4], %s1914
        %s1916 = sand.u32 %s181, 1
        %s1917 = smul.addr %s1916, 32
        %s1918 = scalar_lea.vmem [#allocation3], %s1917
        // Predicated region
        $region90: #{tpu_custom_call.1} parent=84 // pred_check
          %p1919 = pneg %p191
        $region91: #{tpu_custom_call.1} parent=84 // pred_check_branch
          %1921 = sbr.rel (%p1919) target = $region93
        $region92: #{tpu_custom_call.1} parent=84 // pred_region
          %s1922 = smul.u32 4, %s21
          %s1924 = ssub.s32 512, 512
          %1925 = vsyncadd %s1915, %s1924
          %s1926 = smul.addr %s1922, 128
          %s1927 = scalar_lea.hbm %s7, %s1926
          %s1928 = sshll.u32 %s1918, 4
          %s1929 = int_to_ptr.vmem [resolvable:$true] %s1928
          %1934 = dma.vmem_to_hbm [thread:$0]  %s1929, 512, %s1927, %s1915, 128, 128, 8
        $region93: #{tpu_custom_call.1} parent=84 // pred_fallthru
          _
      $region85: #{tpu_custom_call.1} parent=5 // pred_fallthru
        _
      %p1935 = scmp.le.s32.totalorder 2, %s16
      // Predicated region
      $region94: #{tpu_custom_call.1} parent=5 // pred_check
        %p1936 = pneg %p1935
      $region95: #{tpu_custom_call.1} parent=5 // pred_check_branch
        %1938 = sbr.rel (%p1936) target = $region97
      $region96: #{tpu_custom_call.1} parent=5 // pred_region
        %s1939 = ssub.s32 %s16, 2
        // Predicated region
        $region98: #{tpu_custom_call.1} parent=96 // pred_check
          %p1940 = pneg %p197
        $region99: #{tpu_custom_call.1} parent=96 // pred_check_branch
          %1942 = sbr.rel (%p1940) target = $region101
        $region100: #{tpu_custom_call.1} parent=96 // pred_region
          %s1943 = sand.u32 %s182, 1
          %s1944 = scalar_lea.sflag [#allocation4], %s1943
          %s1945 = sand.u32 %s182, 1
          %s1946 = smul.addr %s1945, 32
          %s1947 = scalar_lea.vmem [#allocation3], %s1946
          %1948 = dma.done %s1944, 512
        $region101: #{tpu_custom_call.1} parent=96 // pred_fallthru
          _
      $region97: #{tpu_custom_call.1} parent=5 // pred_fallthru
        _
    $region6: #{tpu_custom_call.1} parent=1 // loop_footer
      %s20 = sadd.s32 1, %s16
    $region7: #{tpu_custom_call.1} parent=1 // loop_footer_branch
      %15 = sbr.rel target = $region3
    $region8: #{tpu_custom_call.1} parent=1 // loop_exit
      _
    %1949 = vsyncpa [#allocation4], 1
    %s1950 = scalar_lea.sflag [#allocation4], 1
    %1951 = vsyncpa %s1950, 1

</llo_original>
